<compile_context>
chip_gen: v6e
topology: v6e:2x2x1
jax: 0.10.0
libtpu: 0.0.40
codegen_flags: <defaults>
</compile_context>

<pallas_src>
import jax
import jax.numpy as jnp
import numpy as np
from jax.experimental import pallas as pl
from jax.experimental.pallas import tpu as pltpu

# ----------------------------- configuration ------------------------------
VOCAB_SIZE = 50
EMBED_DIM = 32            # embedding_dim
OUT_CHANNELS = 128        # out_channels
N_CLASS = 1
KERNEL_HEIGHTS = (3, 5, 6)
LEAKY_SLOPE = 0.01        # nn.LeakyReLU default negative_slope
BATCH = 2
SEQ_LEN = 16

NUM_SHIFTS = max(KERNEL_HEIGHTS)                      # 6  -> K = 6*32 = 192
N_FEAT = len(KERNEL_HEIGHTS) * OUT_CHANNELS           # 384
VOCAB_PAD = ((VOCAB_SIZE + 63) // 64) * 64            # 64-lane padded vocab
PAD_ID = VOCAB_SIZE                                   # hits an all-zero padded row
NEG_BIG = -1e30                                       # additive pool-mask fill


# ------------------------------ Pallas kernel ------------------------------
def phonetic_cnn_kernel(tok_ref, emb_ref, wc_ref, bc_ref, mask_ref, lw_ref, lb_ref,
                        out_ref):
    """Fused forward: one-hot gather + conv + LeakyReLU + max-pool + linear.

    tok_ref  : (N_PAD, 1)        int32  VMEM  flattened token ids, tail = PAD_ID
    emb_ref  : (VOCAB_PAD, D)    f32    VMEM  zero-row-padded embedding table
    wc_ref   : (NUM_SHIFTS*D, F) f32    VMEM  prepacked conv weights (zero rows dh>=kh)
    bc_ref   : (1, F)            f32    VMEM  concatenated conv biases
    mask_ref : (L, F)            f32    VMEM  additive pool mask (0 valid / -1e30)
    lw_ref   : (1, F)            f32    VMEM  linear weight (torch (out,in) layout)
    lb_ref   : (1, 1)            f32    VMEM  linear bias
    out_ref  : (B, 1)            f32    VMEM
    """
    NP = tok_ref.shape[0]
    V, D = emb_ref.shape
    F = wc_ref.shape[1]
    L = mask_ref.shape[0]
    B = out_ref.shape[0]
    N = B * L

    # ---- 1. one-hot MXU embedding gather (no scalar loops, no scratch) ----
    tok = tok_ref[...]                                             # (NP, 1) int32
    onehot = (tok == jax.lax.broadcasted_iota(jnp.int32, (NP, V), 1)
              ).astype(jnp.float32)                                # (NP, V)
    x_pad = jnp.dot(onehot, emb_ref[...],
                    preferred_element_type=jnp.float32)            # (NP, D); pad rows = 0

    # ---- 2. all convs as accumulated shifted matmuls (shared across kernel heights) ----
    # y[r] = sum_dh x[r+dh] @ W_dh.  Rows reaching past a batch's valid window hit
    # zero weight rows (dh >= kh) or are masked before the max-pool, so the padding
    # never leaks into the result.
    y = None
    for dh in range(NUM_SHIFTS):                                   # 6, static unroll
        x_sh = jax.lax.slice_in_dim(x_pad, dh, dh + N, axis=0)     # (N, D)
        part = jnp.dot(x_sh, wc_ref[pl.ds(dh * D, D), :],
                       preferred_element_type=jnp.float32)         # (N, F)
        y = part if y is None else y + part

    # ---- 3. bias + LeakyReLU, one batched pass ----
    y = y + bc_ref[...]
    y = jnp.where(y > 0, y, LEAKY_SLOPE * y)                       # (N, F)

    # ---- 4. max-pool over time with the precomputed additive mask ----
    mask = mask_ref[...]                                           # (L, F)
    pooled = [jnp.max(jax.lax.slice_in_dim(y, b * L, (b + 1) * L, axis=0) + mask,
                      axis=0, keepdims=True)
              for b in range(B)]                                   # aligned 16-row slices
    fc = jnp.concatenate(pooled, axis=0)                           # (B, F), registers

    # TODO(synk): nn.Dropout is identity in eval mode; training-mode dropout not implemented.

    # ---- 5. final Linear (n_class = 1): VPU multiply + lane reduce ----
    out_ref[...] = jnp.sum(fc * lw_ref[...], axis=1, keepdims=True) + lb_ref[...]


# ------------------------------ wrapper (glue) ------------------------------
def phonetic_cnn_forward(tokens, params):
    """tokens: (B, L) int -> (B * n_class,) float32 (n_class = 1)."""
    B, L = tokens.shape
    N = B * L
    n_pad = ((N + NUM_SHIFTS - 1 + 7) // 8) * 8         # sublane-aligned gather rows

    tok_flat = tokens.reshape(N).astype(jnp.int32)
    tok_col = jnp.full((n_pad, 1), PAD_ID, jnp.int32).at[:N, 0].set(tok_flat)

    vmem = pl.BlockSpec(memory_space=pltpu.MemorySpace.VMEM)
    out = pl.pallas_call(
        phonetic_cnn_kernel,
        out_shape=jax.ShapeDtypeStruct((B, N_CLASS), jnp.float32),
        in_specs=[vmem] * 7,
        out_specs=vmem,
        # Gridless: total resident data < 1 MiB, far under VMEM on v5e/v6e/v7x.
        # For a throughput deployment (B >= 16 so M = B*L reaches the MXU height),
        # add grid=(pl.cdiv(B, TB),) over batch with
        # compiler_params=pltpu.CompilerParams(dimension_semantics=("parallel",))
        # so v7x's second TensorCore is used; per-block working set stays tiny.
    )(tok_col, params["emb_pad"], params["conv_w_cat"], params["conv_b_cat"],
      params["pool_mask"], params["lin_w"], params["lin_b"])
    return out.reshape(-1)                               # .view(-1)


# ------------------------- deterministic parameters -------------------------
def init_params(key):
    n_k = len(KERNEL_HEIGHTS)
    keys = jax.random.split(key, 2 * n_k + 3)
    # nn.Embedding default init: N(0, 1) (PhoneticCNN never re-initializes it).
    embedding = jax.random.normal(keys[0], (VOCAB_SIZE, EMBED_DIM), jnp.float32)
    emb_pad = jnp.zeros((VOCAB_PAD, EMBED_DIM), jnp.float32).at[:VOCAB_SIZE].set(embedding)

    conv_w_torch, conv_b = [], []
    for i, kh in enumerate(KERNEL_HEIGHTS):
        fan_in = 1 * kh * EMBED_DIM
        fan_out = OUT_CHANNELS * kh * EMBED_DIM
        wb = float(np.sqrt(6.0 / (fan_in + fan_out)))          # xavier_uniform
        w = jax.random.uniform(keys[1 + 2 * i], (OUT_CHANNELS, 1, kh, EMBED_DIM),
                               jnp.float32, -wb, wb)
        bb = float(1.0 / np.sqrt(fan_in))                      # Conv2d default bias init
        b = jax.random.uniform(keys[2 + 2 * i], (OUT_CHANNELS,), jnp.float32, -bb, bb)
        conv_w_torch.append(w)
        conv_b.append(b)

    # Prepack conv weights once: block [dh*D:(dh+1)*D, k*C:(k+1)*C] = W_k[:, 0, dh, :].T;
    # rows with dh >= kh_k stay zero.  K = NUM_SHIFTS*D = 192 (Mosaic pads the MXU
    # contraction itself; no extra zero shift blocks).
    wc = jnp.zeros((NUM_SHIFTS * EMBED_DIM, N_FEAT), jnp.float32)
    for k, kh in enumerate(KERNEL_HEIGHTS):
        for dh in range(kh):
            blk = jnp.transpose(conv_w_torch[k][:, 0, dh, :])   # (D, C)
            wc = wc.at[dh * EMBED_DIM:(dh + 1) * EMBED_DIM,
                       k * OUT_CHANNELS:(k + 1) * OUT_CHANNELS].set(blk)
    bc = jnp.concatenate(conv_b).reshape(1, N_FEAT)

    # Additive max-pool mask over time: 0 where t < L - kh + 1, else -1e30 (built once;
    # safe because L >= max kernel height, so every channel keeps >= 1 valid step).
    kh_per_col = np.repeat(np.asarray(KERNEL_HEIGHTS), OUT_CHANNELS)          # (F,)
    valid = np.arange(SEQ_LEN)[:, None] < (SEQ_LEN - kh_per_col + 1)[None, :]  # (L, F)
    pool_mask = jnp.asarray(np.where(valid, 0.0, NEG_BIG), dtype=jnp.float32)

    in_features = N_FEAT
    lwb = float(np.sqrt(6.0 / (in_features + N_CLASS)))        # xavier_uniform
    lin_w = jax.random.uniform(keys[-2], (N_CLASS, in_features), jnp.float32, -lwb, lwb)
    lbb = float(1.0 / np.sqrt(in_features))                    # Linear default bias init
    lin_b = jax.random.uniform(keys[-1], (1, N_CLASS), jnp.float32, -lbb, lbb)

    return dict(embedding=embedding, emb_pad=emb_pad,
                conv_w_torch=conv_w_torch, conv_b=conv_b,
                conv_w_cat=wc, conv_b_cat=bc, pool_mask=pool_mask,
                lin_w=lin_w, lin_b=lin_b)


# ---------------------------- pure-JAX reference ----------------------------
def reference_forward(tokens, params):
    emb = params["embedding"][tokens]                 # (B, L, D)
    x = emb[:, None, :, :]                            # NCHW  (B, 1, L, D)
    feats = []
    for w, b in zip(params["conv_w_torch"], params["conv_b"]):
        y = jax.lax.conv_general_dilated(
            x, w, window_strides=(1, 1), padding="VALID",
            dimension_numbers=("NCHW", "OIHW", "NCHW"))   # (B, C, T, 1)
        y = y + b.reshape(1, -1, 1, 1)
        y = y[..., 0]                                     # squeeze(3)
        y = jnp.where(y > 0, y, LEAKY_SLOPE * y)          # LeakyReLU
        feats.append(jnp.max(y, axis=2))                  # max_pool1d over time
    fc_in = jnp.concatenate(feats, axis=1)                # (B, 3*C)
    out = fc_in @ params["lin_w"].T + params["lin_b"]     # (B, 1)
    return out.reshape(-1)


# ----------------------------------- main -----------------------------------
if __name__ == "__main__":
    key = jax.random.PRNGKey(0)
    k_params, k_tokens = jax.random.split(key)
    params = init_params(k_params)
    tokens = jax.random.randint(k_tokens, (BATCH, SEQ_LEN), 0, VOCAB_SIZE,
                                dtype=jnp.int32)

    out = jax.block_until_ready(phonetic_cnn_forward(tokens, params))
    ref = jax.block_until_ready(reference_forward(tokens, params))
    np.testing.assert_allclose(np.asarray(out), np.asarray(ref),
                               rtol=1e-4, atol=1e-4)
    assert out.shape == (BATCH * N_CLASS,)
    print("KERNEL_OK")
</pallas_src>

<mosaic_0001>
module attributes {stable_mosaic.version = 11 : i64} {
  func.func @phonetic_cnn_kernel(%arg0: memref<40x1xi32, #tpu.memory_space<vmem>>, %arg1: memref<64x32xf32, #tpu.memory_space<vmem>>, %arg2: memref<192x384xf32, #tpu.memory_space<vmem>>, %arg3: memref<1x384xf32, #tpu.memory_space<vmem>>, %arg4: memref<16x384xf32, #tpu.memory_space<vmem>>, %arg5: memref<1x384xf32, #tpu.memory_space<vmem>>, %arg6: memref<1x1xf32, #tpu.memory_space<vmem>>, %arg7: memref<2x1xf32, #tpu.memory_space<vmem>>) attributes {dimension_semantics = [], scalar_prefetch = 0 : i64, scratch_operands = 0 : i64, tpu.core_type = #tpu.core_type<tc>} {
    %c0 = arith.constant 0 : index
    %c0_0 = arith.constant 0 : index
    %0 = vector.load %arg0[%c0, %c0_0] : memref<40x1xi32, #tpu.memory_space<vmem>>, vector<40x1xi32>
    %1 = tpu.iota {dimensions = array<i32: 1>} : vector<40x64xi32>
    %2 = vector.broadcast %0 : vector<40x1xi32> to vector<40x64xi32>
    %3 = arith.cmpi eq, %2, %1 : vector<40x64xi32>
    %4 = arith.extui %3 : vector<40x64xi1> to vector<40x64xi32>
    %5 = arith.sitofp %4 : vector<40x64xi32> to vector<40x64xf32>
    %c0_1 = arith.constant 0 : index
    %c0_2 = arith.constant 0 : index
    %6 = vector.load %arg1[%c0_1, %c0_2] : memref<64x32xf32, #tpu.memory_space<vmem>>, vector<64x32xf32>
    %cst = arith.constant dense<0.000000e+00> : vector<40x32xf32>
    %7 = tpu.matmul %5, %6, %cst {dimension_numbers = #tpu.dot_dimension_numbers<[1], [0], [0], [1], [0, 0, 1, 1], [], []>} : vector<40x64xf32>, vector<64x32xf32>, vector<40x32xf32> -> vector<40x32xf32>
    %8 = vector.extract_strided_slice %7 {offsets = [0, 0], sizes = [32, 32], strides = [1, 1]} : vector<40x32xf32> to vector<32x32xf32>
    %c0_3 = arith.constant 0 : index
    %c0_4 = arith.constant 0 : index
    %9 = vector.load %arg2[%c0_3, %c0_4] : memref<192x384xf32, #tpu.memory_space<vmem>>, vector<32x384xf32>
    %cst_5 = arith.constant dense<0.000000e+00> : vector<32x384xf32>
    %10 = tpu.matmul %8, %9, %cst_5 {dimension_numbers = #tpu.dot_dimension_numbers<[1], [0], [0], [1], [0, 0, 1, 1], [], []>} : vector<32x32xf32>, vector<32x384xf32>, vector<32x384xf32> -> vector<32x384xf32>
    %11 = vector.extract_strided_slice %7 {offsets = [1, 0], sizes = [32, 32], strides = [1, 1]} : vector<40x32xf32> to vector<32x32xf32>
    %c32 = arith.constant 32 : index
    %c0_6 = arith.constant 0 : index
    %12 = vector.load %arg2[%c32, %c0_6] : memref<192x384xf32, #tpu.memory_space<vmem>>, vector<32x384xf32>
    %cst_7 = arith.constant dense<0.000000e+00> : vector<32x384xf32>
    %13 = tpu.matmul %11, %12, %cst_7 {dimension_numbers = #tpu.dot_dimension_numbers<[1], [0], [0], [1], [0, 0, 1, 1], [], []>} : vector<32x32xf32>, vector<32x384xf32>, vector<32x384xf32> -> vector<32x384xf32>
    %14 = arith.addf %10, %13 : vector<32x384xf32>
    %15 = vector.extract_strided_slice %7 {offsets = [2, 0], sizes = [32, 32], strides = [1, 1]} : vector<40x32xf32> to vector<32x32xf32>
    %c64 = arith.constant 64 : index
    %c0_8 = arith.constant 0 : index
    %16 = vector.load %arg2[%c64, %c0_8] : memref<192x384xf32, #tpu.memory_space<vmem>>, vector<32x384xf32>
    %cst_9 = arith.constant dense<0.000000e+00> : vector<32x384xf32>
    %17 = tpu.matmul %15, %16, %cst_9 {dimension_numbers = #tpu.dot_dimension_numbers<[1], [0], [0], [1], [0, 0, 1, 1], [], []>} : vector<32x32xf32>, vector<32x384xf32>, vector<32x384xf32> -> vector<32x384xf32>
    %18 = arith.addf %14, %17 : vector<32x384xf32>
    %19 = vector.extract_strided_slice %7 {offsets = [3, 0], sizes = [32, 32], strides = [1, 1]} : vector<40x32xf32> to vector<32x32xf32>
    %c96 = arith.constant 96 : index
    %c0_10 = arith.constant 0 : index
    %20 = vector.load %arg2[%c96, %c0_10] : memref<192x384xf32, #tpu.memory_space<vmem>>, vector<32x384xf32>
    %cst_11 = arith.constant dense<0.000000e+00> : vector<32x384xf32>
    %21 = tpu.matmul %19, %20, %cst_11 {dimension_numbers = #tpu.dot_dimension_numbers<[1], [0], [0], [1], [0, 0, 1, 1], [], []>} : vector<32x32xf32>, vector<32x384xf32>, vector<32x384xf32> -> vector<32x384xf32>
    %22 = arith.addf %18, %21 : vector<32x384xf32>
    %23 = vector.extract_strided_slice %7 {offsets = [4, 0], sizes = [32, 32], strides = [1, 1]} : vector<40x32xf32> to vector<32x32xf32>
    %c128 = arith.constant 128 : index
    %c0_12 = arith.constant 0 : index
    %24 = vector.load %arg2[%c128, %c0_12] : memref<192x384xf32, #tpu.memory_space<vmem>>, vector<32x384xf32>
    %cst_13 = arith.constant dense<0.000000e+00> : vector<32x384xf32>
    %25 = tpu.matmul %23, %24, %cst_13 {dimension_numbers = #tpu.dot_dimension_numbers<[1], [0], [0], [1], [0, 0, 1, 1], [], []>} : vector<32x32xf32>, vector<32x384xf32>, vector<32x384xf32> -> vector<32x384xf32>
    %26 = arith.addf %22, %25 : vector<32x384xf32>
    %27 = vector.extract_strided_slice %7 {offsets = [5, 0], sizes = [32, 32], strides = [1, 1]} : vector<40x32xf32> to vector<32x32xf32>
    %c160 = arith.constant 160 : index
    %c0_14 = arith.constant 0 : index
    %28 = vector.load %arg2[%c160, %c0_14] : memref<192x384xf32, #tpu.memory_space<vmem>>, vector<32x384xf32>
    %cst_15 = arith.constant dense<0.000000e+00> : vector<32x384xf32>
    %29 = tpu.matmul %27, %28, %cst_15 {dimension_numbers = #tpu.dot_dimension_numbers<[1], [0], [0], [1], [0, 0, 1, 1], [], []>} : vector<32x32xf32>, vector<32x384xf32>, vector<32x384xf32> -> vector<32x384xf32>
    %30 = arith.addf %26, %29 : vector<32x384xf32>
    %c0_16 = arith.constant 0 : index
    %c0_17 = arith.constant 0 : index
    %31 = vector.load %arg3[%c0_16, %c0_17] : memref<1x384xf32, #tpu.memory_space<vmem>>, vector<1x384xf32>
    %32 = vector.broadcast %31 : vector<1x384xf32> to vector<32x384xf32>
    %33 = arith.addf %30, %32 : vector<32x384xf32>
    %cst_18 = arith.constant 0.000000e+00 : f32
    %34 = vector.broadcast %cst_18 : f32 to vector<32x384xf32>
    %35 = arith.cmpf ogt, %33, %34 : vector<32x384xf32>
    %cst_19 = arith.constant 0.00999999977 : f32
    %36 = vector.broadcast %cst_19 : f32 to vector<32x384xf32>
    %37 = arith.mulf %36, %33 : vector<32x384xf32>
    %38 = arith.select %35, %33, %37 : vector<32x384xi1>, vector<32x384xf32>
    %c0_20 = arith.constant 0 : index
    %c0_21 = arith.constant 0 : index
    %39 = vector.load %arg4[%c0_20, %c0_21] : memref<16x384xf32, #tpu.memory_space<vmem>>, vector<16x384xf32>
    %40 = vector.extract_strided_slice %38 {offsets = [0, 0], sizes = [16, 384], strides = [1, 1]} : vector<32x384xf32> to vector<16x384xf32>
    %41 = arith.addf %40, %39 : vector<16x384xf32>
    %cst_22 = arith.constant dense<0xFF800000> : vector<384xf32>
    %42 = vector.multi_reduction <maximumf>, %41, %cst_22 [0] : vector<16x384xf32> to vector<384xf32>
    %43 = vector.shape_cast %42 : vector<384xf32> to vector<1x384xf32>
    %44 = vector.extract_strided_slice %38 {offsets = [16, 0], sizes = [16, 384], strides = [1, 1]} : vector<32x384xf32> to vector<16x384xf32>
    %45 = arith.addf %44, %39 : vector<16x384xf32>
    %cst_23 = arith.constant dense<0xFF800000> : vector<384xf32>
    %46 = vector.multi_reduction <maximumf>, %45, %cst_23 [0] : vector<16x384xf32> to vector<384xf32>
    %47 = vector.shape_cast %46 : vector<384xf32> to vector<1x384xf32>
    %48 = tpu.concatenate %43, %47 in 0 : vector<1x384xf32>, vector<1x384xf32> -> vector<2x384xf32>
    %c0_24 = arith.constant 0 : index
    %c0_25 = arith.constant 0 : index
    %49 = vector.load %arg5[%c0_24, %c0_25] : memref<1x384xf32, #tpu.memory_space<vmem>>, vector<1x384xf32>
    %50 = vector.broadcast %49 : vector<1x384xf32> to vector<2x384xf32>
    %51 = arith.mulf %48, %50 : vector<2x384xf32>
    %cst_26 = arith.constant dense<0.000000e+00> : vector<2xf32>
    %52 = vector.multi_reduction <add>, %51, %cst_26 [1] : vector<2x384xf32> to vector<2xf32>
    %53 = vector.shape_cast %52 : vector<2xf32> to vector<2x1xf32>
    %c0_27 = arith.constant 0 : index
    %c0_28 = arith.constant 0 : index
    %54 = vector.load %arg6[%c0_27, %c0_28] : memref<1x1xf32, #tpu.memory_space<vmem>>, vector<1x1xf32>
    %55 = vector.broadcast %54 : vector<1x1xf32> to vector<2x1xf32>
    %56 = arith.addf %53, %55 : vector<2x1xf32>
    %c0_29 = arith.constant 0 : index
    %c0_30 = arith.constant 0 : index
    %57 = vector.load %arg7[%c0_29, %c0_30] : memref<2x1xf32, #tpu.memory_space<vmem>>, vector<2x1xf32>
    tpu.vector_store %arg7[%c0_29, %c0_30], %56 {strides = array<i32>} : memref<2x1xf32, #tpu.memory_space<vmem>>, vector<2x1xf32>,
    return
  }
}

</mosaic_0001>

<llo_original>
// kernel: tpu_custom_call.1
$region0: #{tpu_custom_call.1}
  #allocation0 [shape = 'u32[]', space=smem, size = 0x4, offset = 0x4, fixed_abs, tag = 'smem constant byte address 0x4 - core index']
  #allocation1 [shape = 'u32[144,128]{1,0:T(1,128)}', space=vmem, size = 0x12000, scoped, tag = 'internal scratch']
  #allocation2 [shape = 'f32[1,1]{1,0:T(1,128)S(1)}', space=vmem, size = 0x200, scoped, tag = 'scoped memory for tpu_custom_call.1']
  %s0 = inlined_call_operand.vmem [shape: s32[40,1], index: 0, kind: input, shape index: {}]
  %s1 = inlined_call_operand.vmem [shape: f32[64,32], index: 1, kind: input, shape index: {}]
  %s2 = inlined_call_operand.hbm [shape: f32[192,384], index: 2, kind: input, shape index: {}]
  %s3 = inlined_call_operand.vmem [shape: f32[1,384], index: 3, kind: input, shape index: {}]
  %s4 = inlined_call_operand.vmem [shape: f32[16,384], index: 4, kind: input, shape index: {}]
  %s5 = inlined_call_operand.vmem [shape: f32[1,384], index: 5, kind: input, shape index: {}]
  %s6 = inlined_call_operand.<no memory space> [shape: f32[1,1], index: 6, kind: input, shape index: {}]
  %s7 = inlined_call_operand.vmem [shape: f32[2,1], index: 7, kind: output, shape index: {}]
  %s8 = sld [smem:[#allocation0]]
  $region42: #{tpu_custom_call.1} parent=0
    _
  %s10 = ssub.s32 1, %s8
  %s11 = scalar_select 0, %s10, %s8
  %v12 = vstv %s6
  %13 = vst [vmem:[#allocation2] sm:$0x1] %v12
  $region1: #{tpu_custom_call.1} parent=0
    #allocation3 [shape = 'u8[294912]{0}', space=vmem, size = 0x48000, scoped, tag = 'input window, operand 2, single buffered']
    #allocation4 [shape = 's32[1]{0}', space=sflag, size = 0x4, scoped, tag = 'scoped memory for tpu_custom_call.1']
    %14 = vsyncpa [#allocation4], 0
    // Predicated region
    $region2: #{tpu_custom_call.1} parent=1 // pred_check
      _
    $region3: #{tpu_custom_call.1} parent=1 // pred_check_branch
      %16 = sbr.rel (0) target = $region5
    $region4: #{tpu_custom_call.1} parent=1 // pred_region
      _
    $region5: #{tpu_custom_call.1} parent=1 // pred_fallthru
      _
    // Predicated region
    $region6: #{tpu_custom_call.1} parent=1 // pred_check
      _
    $region7: #{tpu_custom_call.1} parent=1 // pred_check_branch
      %18 = sbr.rel (0) target = $region9
    $region8: #{tpu_custom_call.1} parent=1 // pred_region
      _
    $region9: #{tpu_custom_call.1} parent=1 // pred_fallthru
      _
    // Predicated region
    $region10: #{tpu_custom_call.1} parent=1 // pred_check
      _
    $region11: #{tpu_custom_call.1} parent=1 // pred_check_branch
      %20 = sbr.rel (0) target = $region13
    $region12: #{tpu_custom_call.1} parent=1 // pred_region
      %s22 = ssub.s32 9216, 9216
      %23 = vsyncadd [#allocation4], %s22
      %s24 = sshll.u32 [#allocation3], 4
      %s25 = int_to_ptr.vmem [resolvable:$true] %s24
      %30 = dma.hbm_to_vmem [thread:$0]  %s2, 9216, %s25, [#allocation4], 384, 384, 24
    $region13: #{tpu_custom_call.1} parent=1 // pred_fallthru
      _
    // Predicated region
    $region14: #{tpu_custom_call.1} parent=1 // pred_check
      _
    $region15: #{tpu_custom_call.1} parent=1 // pred_check_branch
      %32 = sbr.rel (0) target = $region17
    $region16: #{tpu_custom_call.1} parent=1 // pred_region
      _
    $region17: #{tpu_custom_call.1} parent=1 // pred_fallthru
      _
    // Predicated region
    $region18: #{tpu_custom_call.1} parent=1 // pred_check
      _
    $region19: #{tpu_custom_call.1} parent=1 // pred_check_branch
      %34 = sbr.rel (0) target = $region21
    $region20: #{tpu_custom_call.1} parent=1 // pred_region
      _
    $region21: #{tpu_custom_call.1} parent=1 // pred_fallthru
      _
    // Predicated region
    $region22: #{tpu_custom_call.1} parent=1 // pred_check
      _
    $region23: #{tpu_custom_call.1} parent=1 // pred_check_branch
      %36 = sbr.rel (0) target = $region25
    $region24: #{tpu_custom_call.1} parent=1 // pred_region
      _
    $region25: #{tpu_custom_call.1} parent=1 // pred_fallthru
      _
    // Predicated region
    $region26: #{tpu_custom_call.1} parent=1 // pred_check
      _
    $region27: #{tpu_custom_call.1} parent=1 // pred_check_branch
      %38 = sbr.rel (0) target = $region29
    $region28: #{tpu_custom_call.1} parent=1 // pred_region
      _
    $region29: #{tpu_custom_call.1} parent=1 // pred_fallthru
      _
    // Predicated region
    $region30: #{tpu_custom_call.1} parent=1 // pred_check
      _
    $region31: #{tpu_custom_call.1} parent=1 // pred_check_branch
      %40 = sbr.rel (0) target = $region33
    $region32: #{tpu_custom_call.1} parent=1 // pred_region
      %41 = dma.done [#allocation4], 9216
    $region33: #{tpu_custom_call.1} parent=1 // pred_fallthru
      _
    %v42 = vld [vmem:[%s0] sm:$0xff]
    %v43 = vld [vmem:[%s0 + $0x8] sm:$0xff]
    %v44 = vld [vmem:[%s0 + $0x10] sm:$0xff]
    %v45 = vld [vmem:[%s0 + $0x18] sm:$0xff]
    %v46 = vld [vmem:[%s0 + $0x20] sm:$0xff]
    %v47 = vlaneseq
    %v48 = vand.u32 %v47, 127
    %49 = vset.pattern.permute.xlu0 0
    %50 = vperm.xlu0 %49, %v42
    %v51 = vpop.permute.xlu0 %50
    %52 = vset.pattern.permute.xlu0 0
    %53 = vperm.xlu0 %52, %v43
    %v54 = vpop.permute.xlu0 %53
    %55 = vset.pattern.permute.xlu0 0
    %56 = vperm.xlu0 %55, %v44
    %v57 = vpop.permute.xlu0 %56
    %58 = vset.pattern.permute.xlu0 0
    %59 = vperm.xlu0 %58, %v45
    %v60 = vpop.permute.xlu0 %59
    %61 = vset.pattern.permute.xlu0 0
    %62 = vperm.xlu0 %61, %v46
    %v63 = vpop.permute.xlu0 %62
    %vm64 = vcmp.eq.s32.totalorder %v51, %v48
    %vm65 = vcmp.eq.s32.totalorder %v54, %v48
    %vm66 = vcmp.eq.s32.totalorder %v57, %v48
    %vm67 = vcmp.eq.s32.totalorder %v60, %v48
    %vm68 = vcmp.eq.s32.totalorder %v63, %v48
    %v69 = vsel %vm64, 1, 0
    %v70 = vsel %vm65, 1, 0
    %v71 = vsel %vm66, 1, 0
    %v72 = vsel %vm67, 1, 0
    %v73 = vsel %vm68, 1, 0
    %v74 = vcvt.s32.f32 %v69
    %v75 = vcvt.s32.f32 %v70
    %v76 = vcvt.s32.f32 %v71
    %v77 = vcvt.s32.f32 %v72
    %v78 = vcvt.s32.f32 %v73
    %v79 = vld [vmem:[%s1] sm:$0xff]
    %v80 = vld [vmem:[%s1 + $0x8] sm:$0xff]
    %v81 = vld [vmem:[%s1 + $0x10] sm:$0xff]
    %v82 = vld [vmem:[%s1 + $0x18] sm:$0xff]
    %v83 = vld [vmem:[%s1 + $0x20] sm:$0xff]
    %v84 = vld [vmem:[%s1 + $0x28] sm:$0xff]
    %v85 = vld [vmem:[%s1 + $0x30] sm:$0xff]
    %v86 = vld [vmem:[%s1 + $0x38] sm:$0xff]
    %vm87 = vcmask 523264
    %v89 = vsel %vm87, %v74, 0
    %v92 = vsel %vm87, %v75, 0
    %v95 = vsel %vm87, %v76, 0
    %v98 = vsel %vm87, %v77, 0
    %v101 = vsel %vm87, %v78, 0
    %103 = vmatprep.subr.mxu0 0.0
    %104 = vmatpush1.msra.mxu0 0.0
    %105 = vmatprep.subr.mxu0 0.0
    %106 = vmatpush1.msra.mxu0 0.0
    %107 = vmatprep.subr.mxu0 0.0
    %108 = vmatpush1.msra.mxu0 0.0
    %109 = vmatprep.subr.mxu0 0.0
    %110 = vmatpush1.msra.mxu0 0.0
    %111 = vmatprep.subr.mxu0 0.0
    %112 = vmatpush1.msra.mxu0 0.0
    %113 = vmatprep.subr.mxu0 0.0
    %114 = vmatpush1.msra.mxu0 0.0
    %115 = vmatprep.subr.mxu0 0.0
    %116 = vmatpush1.msra.mxu0 0.0
    %117 = vmatprep.subr.mxu0 0.0
    %118 = vmatpush1.msra.mxu0 0.0
    %119 = vmatprep.subr.mxu0 0.0
    %120 = vmatpush1.msra.mxu0 %v86
    %121 = vmatprep.subr.mxu0 0.0
    %122 = vmatpush1.msra.mxu0 %v85
    %123 = vmatprep.subr.mxu0 0.0
    %124 = vmatpush1.msra.mxu0 %v84
    %125 = vmatprep.subr.mxu0 0.0
    %126 = vmatpush1.msra.mxu0 %v83
    %127 = vmatprep.subr.mxu0 0.0
    %128 = vmatpush1.msra.mxu0 %v82
    %129 = vmatprep.subr.mxu0 0.0
    %130 = vmatpush1.msra.mxu0 %v81
    %131 = vmatprep.subr.mxu0 0.0
    %132 = vmatpush1.msra.mxu0 %v80
    %133 = vmatprep.subr.mxu0 0.0
    %134 = vmatpush1.msra.mxu0 %v79
    %135 = vmatprep.subr.mxu0 0.0
    %136 = vmatpush2.msra.mxu0 0.0
    %137 = vmatprep.subr.mxu0 0.0
    %138 = vmatpush2.msra.mxu0 0.0
    %139 = vmatprep.subr.mxu0 0.0
    %140 = vmatpush2.msra.mxu0 0.0
    %141 = vmatprep.subr.mxu0 0.0
    %142 = vmatpush2.msra.mxu0 0.0
    %143 = vmatprep.subr.mxu0 0.0
    %144 = vmatpush2.msra.mxu0 0.0
    %145 = vmatprep.subr.mxu0 0.0
    %146 = vmatpush2.msra.mxu0 0.0
    %147 = vmatprep.subr.mxu0 0.0
    %148 = vmatpush2.msra.mxu0 0.0
    %149 = vmatprep.subr.mxu0 0.0
    %150 = vmatpush2.msra.mxu0 0.0
    %151 = vmatprep.subr.mxu0 0.0
    %152 = vmatpush2.msra.mxu0 0.0
    %153 = vmatprep.subr.mxu0 0.0
    %154 = vmatpush2.msra.mxu0 0.0
    %155 = vmatprep.subr.mxu0 0.0
    %156 = vmatpush2.msra.mxu0 0.0
    %157 = vmatprep.subr.mxu0 0.0
    %158 = vmatpush2.msra.mxu0 0.0
    %159 = vmatprep.subr.mxu0 0.0
    %160 = vmatpush2.msra.mxu0 0.0
    %161 = vmatprep.subr.mxu0 0.0
    %162 = vmatpush2.msra.mxu0 0.0
    %163 = vmatprep.subr.mxu0 0.0
    %164 = vmatpush2.msra.mxu0 0.0
    %165 = vmatprep.subr.mxu0 0.0
    %166 = vmatpush2.msra.mxu0 0.0
    %167 = vmatprep.mubr.f32.mxu0 0.0
    %168 = vmatmul.mubr.f32.gmra.mxu0 %v89
    %v169 = vpop.f32.mrf.mxu0
    %v170 = vadd.f32 0.0, %v169
    %v171 = vpop.f32.mrf.mxu0
    %172 = vmatprep.mubr.f32.mxu0 0.0
    %173 = vmatmul.mubr.f32.gmra.mxu0 %v92
    %v174 = vpop.f32.mrf.mxu0
    %v175 = vadd.f32 0.0, %v174
    %v176 = vpop.f32.mrf.mxu0
    %177 = vmatprep.mubr.f32.mxu0 0.0
    %178 = vmatmul.mubr.f32.gmra.mxu0 %v95
    %v179 = vpop.f32.mrf.mxu0
    %v180 = vadd.f32 0.0, %v179
    %v181 = vpop.f32.mrf.mxu0
    %182 = vmatprep.mubr.f32.mxu0 0.0
    %183 = vmatmul.mubr.f32.gmra.mxu0 %v98
    %v184 = vpop.f32.mrf.mxu0
    %v185 = vadd.f32 0.0, %v184
    %v186 = vpop.f32.mrf.mxu0
    %187 = vmatprep.mubr.f32.mxu0 0.0
    %188 = vmatmul.mubr.f32.gmra.mxu0 %v101
    %v189 = vpop.f32.mrf.mxu0
    %v190 = vadd.f32 0.0, %v189
    %v191 = vpop.f32.mrf.mxu0
    %192 = vdwg.mxu0
    %v193 = vld [vmem:[#allocation3] sm:$0xff]
    %v194 = vld [vmem:[#allocation3 + $0x8] sm:$0xff]
    %v195 = vld [vmem:[#allocation3 + $0x10] sm:$0xff]
    %v196 = vld [vmem:[#allocation3 + $0x18] sm:$0xff]
    %v197 = vld [vmem:[#allocation3 + $0x20] sm:$0xff]
    %v198 = vld [vmem:[#allocation3 + $0x28] sm:$0xff]
    %v199 = vld [vmem:[#allocation3 + $0x30] sm:$0xff]
    %v200 = vld [vmem:[#allocation3 + $0x38] sm:$0xff]
    %v201 = vld [vmem:[#allocation3 + $0x40] sm:$0xff]
    %v202 = vld [vmem:[#allocation3 + $0x48] sm:$0xff]
    %v203 = vld [vmem:[#allocation3 + $0x50] sm:$0xff]
    %v204 = vld [vmem:[#allocation3 + $0x58] sm:$0xff]
    %v205 = vld [vmem:[#allocation3 + $0x60] sm:$0xff]
    %v206 = vld [vmem:[#allocation3 + $0x68] sm:$0xff]
    %v207 = vld [vmem:[#allocation3 + $0x70] sm:$0xff]
    %v208 = vld [vmem:[#allocation3 + $0x78] sm:$0xff]
    %v209 = vld [vmem:[#allocation3 + $0x80] sm:$0xff]
    %v210 = vld [vmem:[#allocation3 + $0x88] sm:$0xff]
    %v211 = vld [vmem:[#allocation3 + $0x90] sm:$0xff]
    %v212 = vld [vmem:[#allocation3 + $0x98] sm:$0xff]
    %v213 = vld [vmem:[#allocation3 + $0xa0] sm:$0xff]
    %v214 = vld [vmem:[#allocation3 + $0xa8] sm:$0xff]
    %v215 = vld [vmem:[#allocation3 + $0xb0] sm:$0xff]
    %v216 = vld [vmem:[#allocation3 + $0xb8] sm:$0xff]
    %vm222 = vcmask 1046528
    %v223 = vrot.slane %v170, 1
    %v224 = vrot.slane %v175, 1
    %v225 = vsel %vm222, %v223, %v224
    %v226 = vrot.slane %v180, 1
    %v227 = vsel %vm222, %v224, %v226
    %v228 = vrot.slane %v185, 1
    %v229 = vsel %vm222, %v226, %v228
    %v230 = vrot.slane %v190, 1
    %v231 = vsel %vm222, %v228, %v230
    %vm232 = vcmask 261120
    %v233 = vsel %vm232, %v225, 0
    %v235 = vsel %vm232, %v227, 0
    %v237 = vsel %vm232, %v229, 0
    %v239 = vsel %vm232, %v231, 0
    %241 = vmatprep.subr.mxu0 0.0
    %242 = vmatpush1.msra.mxu0 0.0
    %243 = vmatprep.subr.mxu0 0.0
    %244 = vmatpush1.msra.mxu0 0.0
    %245 = vmatprep.subr.mxu0 0.0
    %246 = vmatpush1.msra.mxu0 0.0
    %247 = vmatprep.subr.mxu0 0.0
    %248 = vmatpush1.msra.mxu0 0.0
    %249 = vmatprep.subr.mxu0 0.0
    %250 = vmatpush1.msra.mxu0 0.0
    %251 = vmatprep.subr.mxu0 0.0
    %252 = vmatpush1.msra.mxu0 0.0
    %253 = vmatprep.subr.mxu0 0.0
    %254 = vmatpush1.msra.mxu0 0.0
    %255 = vmatprep.subr.mxu0 0.0
    %256 = vmatpush1.msra.mxu0 0.0
    %257 = vmatprep.subr.mxu0 0.0
    %258 = vmatpush1.msra.mxu0 0.0
    %259 = vmatprep.subr.mxu0 0.0
    %260 = vmatpush1.msra.mxu0 0.0
    %261 = vmatprep.subr.mxu0 0.0
    %262 = vmatpush1.msra.mxu0 0.0
    %263 = vmatprep.subr.mxu0 0.0
    %264 = vmatpush1.msra.mxu0 0.0
    %265 = vmatprep.subr.mxu0 %v215
    %266 = vmatpush1.msra.mxu0 %v214
    %267 = vmatprep.subr.mxu0 %v212
    %268 = vmatpush1.msra.mxu0 %v211
    %269 = vmatprep.subr.mxu0 %v209
    %270 = vmatpush1.msra.mxu0 %v208
    %271 = vmatprep.subr.mxu0 %v206
    %272 = vmatpush1.msra.mxu0 %v205
    %273 = vmatprep.subr.mxu0 0.0
    %274 = vmatpush2.msra.mxu0 0.0
    %275 = vmatprep.subr.mxu0 0.0
    %276 = vmatpush2.msra.mxu0 0.0
    %277 = vmatprep.subr.mxu0 0.0
    %278 = vmatpush2.msra.mxu0 0.0
    %279 = vmatprep.subr.mxu0 0.0
    %280 = vmatpush2.msra.mxu0 0.0
    %281 = vmatprep.subr.mxu0 0.0
    %282 = vmatpush2.msra.mxu0 0.0
    %283 = vmatprep.subr.mxu0 0.0
    %284 = vmatpush2.msra.mxu0 0.0
    %285 = vmatprep.subr.mxu0 0.0
    %286 = vmatpush2.msra.mxu0 0.0
    %287 = vmatprep.subr.mxu0 0.0
    %288 = vmatpush2.msra.mxu0 0.0
    %289 = vmatprep.subr.mxu0 0.0
    %290 = vmatpush2.msra.mxu0 0.0
    %291 = vmatprep.subr.mxu0 0.0
    %292 = vmatpush2.msra.mxu0 0.0
    %293 = vmatprep.subr.mxu0 0.0
    %294 = vmatpush2.msra.mxu0 0.0
    %295 = vmatprep.subr.mxu0 0.0
    %296 = vmatpush2.msra.mxu0 0.0
    %297 = vmatprep.subr.mxu0 0.0
    %298 = vmatpush2.msra.mxu0 0.0
    %299 = vmatprep.subr.mxu0 0.0
    %300 = vmatpush2.msra.mxu0 0.0
    %301 = vmatprep.subr.mxu0 0.0
    %302 = vmatpush2.msra.mxu0 0.0
    %303 = vmatprep.subr.mxu0 0.0
    %304 = vmatpush2.msra.mxu0 0.0
    %305 = vmatprep.mubr.f32.mxu0 0.0
    %306 = vmatmul.mubr.f32.gmra.mxu0 %v233
    %v307 = vpop.f32.mrf.mxu0
    %v308 = vadd.f32 0.0, %v307
    %v309 = vpop.f32.mrf.mxu0
    %v310 = vadd.f32 0.0, %v309
    %311 = vmatprep.mubr.f32.mxu0 0.0
    %312 = vmatmul.mubr.f32.gmra.mxu0 %v235
    %v313 = vpop.f32.mrf.mxu0
    %v314 = vadd.f32 0.0, %v313
    %v315 = vpop.f32.mrf.mxu0
    %v316 = vadd.f32 0.0, %v315
    %317 = vmatprep.mubr.f32.mxu0 0.0
    %318 = vmatmul.mubr.f32.gmra.mxu0 %v237
    %v319 = vpop.f32.mrf.mxu0
    %v320 = vadd.f32 0.0, %v319
    %v321 = vpop.f32.mrf.mxu0
    %v322 = vadd.f32 0.0, %v321
    %323 = vmatprep.mubr.f32.mxu0 0.0
    %324 = vmatmul.mubr.f32.gmra.mxu0 %v239
    %v325 = vpop.f32.mrf.mxu0
    %v326 = vadd.f32 0.0, %v325
    %v327 = vpop.f32.mrf.mxu0
    %v328 = vadd.f32 0.0, %v327
    %329 = vdwg.mxu0
    %330 = vmatprep.subr.mxu0 0.0
    %331 = vmatpush1.msra.mxu0 0.0
    %332 = vmatprep.subr.mxu0 0.0
    %333 = vmatpush1.msra.mxu0 0.0
    %334 = vmatprep.subr.mxu0 0.0
    %335 = vmatpush1.msra.mxu0 0.0
    %336 = vmatprep.subr.mxu0 0.0
    %337 = vmatpush1.msra.mxu0 0.0
    %338 = vmatprep.subr.mxu0 0.0
    %339 = vmatpush1.msra.mxu0 0.0
    %340 = vmatprep.subr.mxu0 0.0
    %341 = vmatpush1.msra.mxu0 0.0
    %342 = vmatprep.subr.mxu0 0.0
    %343 = vmatpush1.msra.mxu0 0.0
    %344 = vmatprep.subr.mxu0 0.0
    %345 = vmatpush1.msra.mxu0 0.0
    %346 = vmatprep.subr.mxu0 0.0
    %347 = vmatpush1.msra.mxu0 0.0
    %348 = vmatprep.subr.mxu0 0.0
    %349 = vmatpush1.msra.mxu0 0.0
    %350 = vmatprep.subr.mxu0 0.0
    %351 = vmatpush1.msra.mxu0 0.0
    %352 = vmatprep.subr.mxu0 0.0
    %353 = vmatpush1.msra.mxu0 0.0
    %354 = vmatprep.subr.mxu0 0.0
    %355 = vmatpush1.msra.mxu0 %v216
    %356 = vmatprep.subr.mxu0 0.0
    %357 = vmatpush1.msra.mxu0 %v213
    %358 = vmatprep.subr.mxu0 0.0
    %359 = vmatpush1.msra.mxu0 %v210
    %360 = vmatprep.subr.mxu0 0.0
    %361 = vmatpush1.msra.mxu0 %v207
    %362 = vmatprep.subr.mxu0 0.0
    %363 = vmatpush2.msra.mxu0 0.0
    %364 = vmatprep.subr.mxu0 0.0
    %365 = vmatpush2.msra.mxu0 0.0
    %366 = vmatprep.subr.mxu0 0.0
    %367 = vmatpush2.msra.mxu0 0.0
    %368 = vmatprep.subr.mxu0 0.0
    %369 = vmatpush2.msra.mxu0 0.0
    %370 = vmatprep.subr.mxu0 0.0
    %371 = vmatpush2.msra.mxu0 0.0
    %372 = vmatprep.subr.mxu0 0.0
    %373 = vmatpush2.msra.mxu0 0.0
    %374 = vmatprep.subr.mxu0 0.0
    %375 = vmatpush2.msra.mxu0 0.0
    %376 = vmatprep.subr.mxu0 0.0
    %377 = vmatpush2.msra.mxu0 0.0
    %378 = vmatprep.subr.mxu0 0.0
    %379 = vmatpush2.msra.mxu0 0.0
    %380 = vmatprep.subr.mxu0 0.0
    %381 = vmatpush2.msra.mxu0 0.0
    %382 = vmatprep.subr.mxu0 0.0
    %383 = vmatpush2.msra.mxu0 0.0
    %384 = vmatprep.subr.mxu0 0.0
    %385 = vmatpush2.msra.mxu0 0.0
    %386 = vmatprep.subr.mxu0 0.0
    %387 = vmatpush2.msra.mxu0 0.0
    %388 = vmatprep.subr.mxu0 0.0
    %389 = vmatpush2.msra.mxu0 0.0
    %390 = vmatprep.subr.mxu0 0.0
    %391 = vmatpush2.msra.mxu0 0.0
    %392 = vmatprep.subr.mxu0 0.0
    %393 = vmatpush2.msra.mxu0 0.0
    %394 = vmatprep.mubr.f32.mxu0 0.0
    %395 = vmatmul.mubr.f32.gmra.mxu0 %v233
    %v396 = vpop.f32.mrf.mxu0
    %v397 = vadd.f32 0.0, %v396
    %v398 = vpop.f32.mrf.mxu0
    %399 = vmatprep.mubr.f32.mxu0 0.0
    %400 = vmatmul.mubr.f32.gmra.mxu0 %v235
    %v401 = vpop.f32.mrf.mxu0
    %v402 = vadd.f32 0.0, %v401
    %v403 = vpop.f32.mrf.mxu0
    %404 = vmatprep.mubr.f32.mxu0 0.0
    %405 = vmatmul.mubr.f32.gmra.mxu0 %v237
    %v406 = vpop.f32.mrf.mxu0
    %v407 = vadd.f32 0.0, %v406
    %v408 = vpop.f32.mrf.mxu0
    %409 = vmatprep.mubr.f32.mxu0 0.0
    %410 = vmatmul.mubr.f32.gmra.mxu0 %v239
    %v411 = vpop.f32.mrf.mxu0
    %v412 = vadd.f32 0.0, %v411
    %v413 = vpop.f32.mrf.mxu0
    %414 = vdwg.mxu0
    %v415 = vsel %vm232, %v170, 0
    %v417 = vsel %vm232, %v175, 0
    %v419 = vsel %vm232, %v180, 0
    %v421 = vsel %vm232, %v185, 0
    %423 = vmatprep.subr.mxu0 0.0
    %424 = vmatpush1.msra.mxu0 0.0
    %425 = vmatprep.subr.mxu0 0.0
    %426 = vmatpush1.msra.mxu0 0.0
    %427 = vmatprep.subr.mxu0 0.0
    %428 = vmatpush1.msra.mxu0 0.0
    %429 = vmatprep.subr.mxu0 0.0
    %430 = vmatpush1.msra.mxu0 0.0
    %431 = vmatprep.subr.mxu0 0.0
    %432 = vmatpush1.msra.mxu0 0.0
    %433 = vmatprep.subr.mxu0 0.0
    %434 = vmatpush1.msra.mxu0 0.0
    %435 = vmatprep.subr.mxu0 0.0
    %436 = vmatpush1.msra.mxu0 0.0
    %437 = vmatprep.subr.mxu0 0.0
    %438 = vmatpush1.msra.mxu0 0.0
    %439 = vmatprep.subr.mxu0 0.0
    %440 = vmatpush1.msra.mxu0 0.0
    %441 = vmatprep.subr.mxu0 0.0
    %442 = vmatpush1.msra.mxu0 0.0
    %443 = vmatprep.subr.mxu0 0.0
    %444 = vmatpush1.msra.mxu0 0.0
    %445 = vmatprep.subr.mxu0 0.0
    %446 = vmatpush1.msra.mxu0 0.0
    %447 = vmatprep.subr.mxu0 %v203
    %448 = vmatpush1.msra.mxu0 %v202
    %449 = vmatprep.subr.mxu0 %v200
    %450 = vmatpush1.msra.mxu0 %v199
    %451 = vmatprep.subr.mxu0 %v197
    %452 = vmatpush1.msra.mxu0 %v196
    %453 = vmatprep.subr.mxu0 %v194
    %454 = vmatpush1.msra.mxu0 %v193
    %455 = vmatprep.subr.mxu0 0.0
    %456 = vmatpush2.msra.mxu0 0.0
    %457 = vmatprep.subr.mxu0 0.0
    %458 = vmatpush2.msra.mxu0 0.0
    %459 = vmatprep.subr.mxu0 0.0
    %460 = vmatpush2.msra.mxu0 0.0
    %461 = vmatprep.subr.mxu0 0.0
    %462 = vmatpush2.msra.mxu0 0.0
    %463 = vmatprep.subr.mxu0 0.0
    %464 = vmatpush2.msra.mxu0 0.0
    %465 = vmatprep.subr.mxu0 0.0
    %466 = vmatpush2.msra.mxu0 0.0
    %467 = vmatprep.subr.mxu0 0.0
    %468 = vmatpush2.msra.mxu0 0.0
    %469 = vmatprep.subr.mxu0 0.0
    %470 = vmatpush2.msra.mxu0 0.0
    %471 = vmatprep.subr.mxu0 0.0
    %472 = vmatpush2.msra.mxu0 0.0
    %473 = vmatprep.subr.mxu0 0.0
    %474 = vmatpush2.msra.mxu0 0.0
    %475 = vmatprep.subr.mxu0 0.0
    %476 = vmatpush2.msra.mxu0 0.0
    %477 = vmatprep.subr.mxu0 0.0
    %478 = vmatpush2.msra.mxu0 0.0
    %479 = vmatprep.subr.mxu0 0.0
    %480 = vmatpush2.msra.mxu0 0.0
    %481 = vmatprep.subr.mxu0 0.0
    %482 = vmatpush2.msra.mxu0 0.0
    %483 = vmatprep.subr.mxu0 0.0
    %484 = vmatpush2.msra.mxu0 0.0
    %485 = vmatprep.subr.mxu0 0.0
    %486 = vmatpush2.msra.mxu0 0.0
    %487 = vmatprep.mubr.f32.mxu0 0.0
    %488 = vmatmul.mubr.f32.gmra.mxu0 %v415
    %v489 = vpop.f32.mrf.mxu0
    %v490 = vadd.f32 %v308, %v489
    %v491 = vpop.f32.mrf.mxu0
    %v492 = vadd.f32 %v310, %v491
    %493 = vmatprep.mubr.f32.mxu0 0.0
    %494 = vmatmul.mubr.f32.gmra.mxu0 %v417
    %v495 = vpop.f32.mrf.mxu0
    %v496 = vadd.f32 %v314, %v495
    %v497 = vpop.f32.mrf.mxu0
    %v498 = vadd.f32 %v316, %v497
    %499 = vmatprep.mubr.f32.mxu0 0.0
    %500 = vmatmul.mubr.f32.gmra.mxu0 %v419
    %v501 = vpop.f32.mrf.mxu0
    %v502 = vadd.f32 %v320, %v501
    %v503 = vpop.f32.mrf.mxu0
    %v504 = vadd.f32 %v322, %v503
    %505 = vmatprep.mubr.f32.mxu0 0.0
    %506 = vmatmul.mubr.f32.gmra.mxu0 %v421
    %v507 = vpop.f32.mrf.mxu0
    %v508 = vadd.f32 %v326, %v507
    %v509 = vpop.f32.mrf.mxu0
    %v510 = vadd.f32 %v328, %v509
    %511 = vdwg.mxu0
    %512 = vmatprep.subr.mxu0 0.0
    %513 = vmatpush1.msra.mxu0 0.0
    %514 = vmatprep.subr.mxu0 0.0
    %515 = vmatpush1.msra.mxu0 0.0
    %516 = vmatprep.subr.mxu0 0.0
    %517 = vmatpush1.msra.mxu0 0.0
    %518 = vmatprep.subr.mxu0 0.0
    %519 = vmatpush1.msra.mxu0 0.0
    %520 = vmatprep.subr.mxu0 0.0
    %521 = vmatpush1.msra.mxu0 0.0
    %522 = vmatprep.subr.mxu0 0.0
    %523 = vmatpush1.msra.mxu0 0.0
    %524 = vmatprep.subr.mxu0 0.0
    %525 = vmatpush1.msra.mxu0 0.0
    %526 = vmatprep.subr.mxu0 0.0
    %527 = vmatpush1.msra.mxu0 0.0
    %528 = vmatprep.subr.mxu0 0.0
    %529 = vmatpush1.msra.mxu0 0.0
    %530 = vmatprep.subr.mxu0 0.0
    %531 = vmatpush1.msra.mxu0 0.0
    %532 = vmatprep.subr.mxu0 0.0
    %533 = vmatpush1.msra.mxu0 0.0
    %534 = vmatprep.subr.mxu0 0.0
    %535 = vmatpush1.msra.mxu0 0.0
    %536 = vmatprep.subr.mxu0 0.0
    %537 = vmatpush1.msra.mxu0 %v204
    %538 = vmatprep.subr.mxu0 0.0
    %539 = vmatpush1.msra.mxu0 %v201
    %540 = vmatprep.subr.mxu0 0.0
    %541 = vmatpush1.msra.mxu0 %v198
    %542 = vmatprep.subr.mxu0 0.0
    %543 = vmatpush1.msra.mxu0 %v195
    %544 = vmatprep.subr.mxu0 0.0
    %545 = vmatpush2.msra.mxu0 0.0
    %546 = vmatprep.subr.mxu0 0.0
    %547 = vmatpush2.msra.mxu0 0.0
    %548 = vmatprep.subr.mxu0 0.0
    %549 = vmatpush2.msra.mxu0 0.0
    %550 = vmatprep.subr.mxu0 0.0
    %551 = vmatpush2.msra.mxu0 0.0
    %552 = vmatprep.subr.mxu0 0.0
    %553 = vmatpush2.msra.mxu0 0.0
    %554 = vmatprep.subr.mxu0 0.0
    %555 = vmatpush2.msra.mxu0 0.0
    %556 = vmatprep.subr.mxu0 0.0
    %557 = vmatpush2.msra.mxu0 0.0
    %558 = vmatprep.subr.mxu0 0.0
    %559 = vmatpush2.msra.mxu0 0.0
    %560 = vmatprep.subr.mxu0 0.0
    %561 = vmatpush2.msra.mxu0 0.0
    %562 = vmatprep.subr.mxu0 0.0
    %563 = vmatpush2.msra.mxu0 0.0
    %564 = vmatprep.subr.mxu0 0.0
    %565 = vmatpush2.msra.mxu0 0.0
    %566 = vmatprep.subr.mxu0 0.0
    %567 = vmatpush2.msra.mxu0 0.0
    %568 = vmatprep.subr.mxu0 0.0
    %569 = vmatpush2.msra.mxu0 0.0
    %570 = vmatprep.subr.mxu0 0.0
    %571 = vmatpush2.msra.mxu0 0.0
    %572 = vmatprep.subr.mxu0 0.0
    %573 = vmatpush2.msra.mxu0 0.0
    %574 = vmatprep.subr.mxu0 0.0
    %575 = vmatpush2.msra.mxu0 0.0
    %576 = vmatprep.mubr.f32.mxu0 0.0
    %577 = vmatmul.mubr.f32.gmra.mxu0 %v415
    %v578 = vpop.f32.mrf.mxu0
    %v579 = vadd.f32 %v397, %v578
    %v580 = vpop.f32.mrf.mxu0
    %581 = vmatprep.mubr.f32.mxu0 0.0
    %582 = vmatmul.mubr.f32.gmra.mxu0 %v417
    %v583 = vpop.f32.mrf.mxu0
    %v584 = vadd.f32 %v402, %v583
    %v585 = vpop.f32.mrf.mxu0
    %586 = vmatprep.mubr.f32.mxu0 0.0
    %587 = vmatmul.mubr.f32.gmra.mxu0 %v419
    %v588 = vpop.f32.mrf.mxu0
    %v589 = vadd.f32 %v407, %v588
    %v590 = vpop.f32.mrf.mxu0
    %591 = vmatprep.mubr.f32.mxu0 0.0
    %592 = vmatmul.mubr.f32.gmra.mxu0 %v421
    %v593 = vpop.f32.mrf.mxu0
    %v594 = vadd.f32 %v412, %v593
    %v595 = vpop.f32.mrf.mxu0
    %596 = vdwg.mxu0
    %v597 = vld [vmem:[#allocation3 + $0xc0] sm:$0xff]
    %v598 = vld [vmem:[#allocation3 + $0xc8] sm:$0xff]
    %v599 = vld [vmem:[#allocation3 + $0xd0] sm:$0xff]
    %v600 = vld [vmem:[#allocation3 + $0xd8] sm:$0xff]
    %v601 = vld [vmem:[#allocation3 + $0xe0] sm:$0xff]
    %v602 = vld [vmem:[#allocation3 + $0xe8] sm:$0xff]
    %v603 = vld [vmem:[#allocation3 + $0xf0] sm:$0xff]
    %v604 = vld [vmem:[#allocation3 + $0xf8] sm:$0xff]
    %v605 = vld [vmem:[#allocation3 + $0x100] sm:$0xff]
    %v606 = vld [vmem:[#allocation3 + $0x108] sm:$0xff]
    %v607 = vld [vmem:[#allocation3 + $0x110] sm:$0xff]
    %v608 = vld [vmem:[#allocation3 + $0x118] sm:$0xff]
    %vm609 = vcmask 1045504
    %v610 = vrot.slane %v170, 2
    %v611 = vrot.slane %v175, 2
    %v612 = vsel %vm609, %v610, %v611
    %v613 = vrot.slane %v180, 2
    %v614 = vsel %vm609, %v611, %v613
    %v615 = vrot.slane %v185, 2
    %v616 = vsel %vm609, %v613, %v615
    %v617 = vrot.slane %v190, 2
    %v618 = vsel %vm609, %v615, %v617
    %v619 = vsel %vm232, %v612, 0
    %v621 = vsel %vm232, %v614, 0
    %v623 = vsel %vm232, %v616, 0
    %v625 = vsel %vm232, %v618, 0
    %627 = vmatprep.subr.mxu0 0.0
    %628 = vmatpush1.msra.mxu0 0.0
    %629 = vmatprep.subr.mxu0 0.0
    %630 = vmatpush1.msra.mxu0 0.0
    %631 = vmatprep.subr.mxu0 0.0
    %632 = vmatpush1.msra.mxu0 0.0
    %633 = vmatprep.subr.mxu0 0.0
    %634 = vmatpush1.msra.mxu0 0.0
    %635 = vmatprep.subr.mxu0 0.0
    %636 = vmatpush1.msra.mxu0 0.0
    %637 = vmatprep.subr.mxu0 0.0
    %638 = vmatpush1.msra.mxu0 0.0
    %639 = vmatprep.subr.mxu0 0.0
    %640 = vmatpush1.msra.mxu0 0.0
    %641 = vmatprep.subr.mxu0 0.0
    %642 = vmatpush1.msra.mxu0 0.0
    %643 = vmatprep.subr.mxu0 0.0
    %644 = vmatpush1.msra.mxu0 0.0
    %645 = vmatprep.subr.mxu0 0.0
    %646 = vmatpush1.msra.mxu0 0.0
    %647 = vmatprep.subr.mxu0 0.0
    %648 = vmatpush1.msra.mxu0 0.0
    %649 = vmatprep.subr.mxu0 0.0
    %650 = vmatpush1.msra.mxu0 0.0
    %651 = vmatprep.subr.mxu0 %v607
    %652 = vmatpush1.msra.mxu0 %v606
    %653 = vmatprep.subr.mxu0 %v604
    %654 = vmatpush1.msra.mxu0 %v603
    %655 = vmatprep.subr.mxu0 %v601
    %656 = vmatpush1.msra.mxu0 %v600
    %657 = vmatprep.subr.mxu0 %v598
    %658 = vmatpush1.msra.mxu0 %v597
    %659 = vmatprep.subr.mxu0 0.0
    %660 = vmatpush2.msra.mxu0 0.0
    %661 = vmatprep.subr.mxu0 0.0
    %662 = vmatpush2.msra.mxu0 0.0
    %663 = vmatprep.subr.mxu0 0.0
    %664 = vmatpush2.msra.mxu0 0.0
    %665 = vmatprep.subr.mxu0 0.0
    %666 = vmatpush2.msra.mxu0 0.0
    %667 = vmatprep.subr.mxu0 0.0
    %668 = vmatpush2.msra.mxu0 0.0
    %669 = vmatprep.subr.mxu0 0.0
    %670 = vmatpush2.msra.mxu0 0.0
    %671 = vmatprep.subr.mxu0 0.0
    %672 = vmatpush2.msra.mxu0 0.0
    %673 = vmatprep.subr.mxu0 0.0
    %674 = vmatpush2.msra.mxu0 0.0
    %675 = vmatprep.subr.mxu0 0.0
    %676 = vmatpush2.msra.mxu0 0.0
    %677 = vmatprep.subr.mxu0 0.0
    %678 = vmatpush2.msra.mxu0 0.0
    %679 = vmatprep.subr.mxu0 0.0
    %680 = vmatpush2.msra.mxu0 0.0
    %681 = vmatprep.subr.mxu0 0.0
    %682 = vmatpush2.msra.mxu0 0.0
    %683 = vmatprep.subr.mxu0 0.0
    %684 = vmatpush2.msra.mxu0 0.0
    %685 = vmatprep.subr.mxu0 0.0
    %686 = vmatpush2.msra.mxu0 0.0
    %687 = vmatprep.subr.mxu0 0.0
    %688 = vmatpush2.msra.mxu0 0.0
    %689 = vmatprep.subr.mxu0 0.0
    %690 = vmatpush2.msra.mxu0 0.0
    %691 = vmatprep.mubr.f32.mxu0 0.0
    %692 = vmatmul.mubr.f32.gmra.mxu0 %v619
    %v693 = vpop.f32.mrf.mxu0
    %v694 = vadd.f32 0.0, %v693
    %v695 = vpop.f32.mrf.mxu0
    %v696 = vadd.f32 0.0, %v695
    %697 = vmatprep.mubr.f32.mxu0 0.0
    %698 = vmatmul.mubr.f32.gmra.mxu0 %v621
    %v699 = vpop.f32.mrf.mxu0
    %v700 = vadd.f32 0.0, %v699
    %v701 = vpop.f32.mrf.mxu0
    %v702 = vadd.f32 0.0, %v701
    %703 = vmatprep.mubr.f32.mxu0 0.0
    %704 = vmatmul.mubr.f32.gmra.mxu0 %v623
    %v705 = vpop.f32.mrf.mxu0
    %v706 = vadd.f32 0.0, %v705
    %v707 = vpop.f32.mrf.mxu0
    %v708 = vadd.f32 0.0, %v707
    %709 = vmatprep.mubr.f32.mxu0 0.0
    %710 = vmatmul.mubr.f32.gmra.mxu0 %v625
    %v711 = vpop.f32.mrf.mxu0
    %v712 = vadd.f32 0.0, %v711
    %v713 = vpop.f32.mrf.mxu0
    %v714 = vadd.f32 0.0, %v713
    %715 = vdwg.mxu0
    %716 = vmatprep.subr.mxu0 0.0
    %717 = vmatpush1.msra.mxu0 0.0
    %718 = vmatprep.subr.mxu0 0.0
    %719 = vmatpush1.msra.mxu0 0.0
    %720 = vmatprep.subr.mxu0 0.0
    %721 = vmatpush1.msra.mxu0 0.0
    %722 = vmatprep.subr.mxu0 0.0
    %723 = vmatpush1.msra.mxu0 0.0
    %724 = vmatprep.subr.mxu0 0.0
    %725 = vmatpush1.msra.mxu0 0.0
    %726 = vmatprep.subr.mxu0 0.0
    %727 = vmatpush1.msra.mxu0 0.0
    %728 = vmatprep.subr.mxu0 0.0
    %729 = vmatpush1.msra.mxu0 0.0
    %730 = vmatprep.subr.mxu0 0.0
    %731 = vmatpush1.msra.mxu0 0.0
    %732 = vmatprep.subr.mxu0 0.0
    %733 = vmatpush1.msra.mxu0 0.0
    %734 = vmatprep.subr.mxu0 0.0
    %735 = vmatpush1.msra.mxu0 0.0
    %736 = vmatprep.subr.mxu0 0.0
    %737 = vmatpush1.msra.mxu0 0.0
    %738 = vmatprep.subr.mxu0 0.0
    %739 = vmatpush1.msra.mxu0 0.0
    %740 = vmatprep.subr.mxu0 0.0
    %741 = vmatpush1.msra.mxu0 %v608
    %742 = vmatprep.subr.mxu0 0.0
    %743 = vmatpush1.msra.mxu0 %v605
    %744 = vmatprep.subr.mxu0 0.0
    %745 = vmatpush1.msra.mxu0 %v602
    %746 = vmatprep.subr.mxu0 0.0
    %747 = vmatpush1.msra.mxu0 %v599
    %748 = vmatprep.subr.mxu0 0.0
    %749 = vmatpush2.msra.mxu0 0.0
    %750 = vmatprep.subr.mxu0 0.0
    %751 = vmatpush2.msra.mxu0 0.0
    %752 = vmatprep.subr.mxu0 0.0
    %753 = vmatpush2.msra.mxu0 0.0
    %754 = vmatprep.subr.mxu0 0.0
    %755 = vmatpush2.msra.mxu0 0.0
    %756 = vmatprep.subr.mxu0 0.0
    %757 = vmatpush2.msra.mxu0 0.0
    %758 = vmatprep.subr.mxu0 0.0
    %759 = vmatpush2.msra.mxu0 0.0
    %760 = vmatprep.subr.mxu0 0.0
    %761 = vmatpush2.msra.mxu0 0.0
    %762 = vmatprep.subr.mxu0 0.0
    %763 = vmatpush2.msra.mxu0 0.0
    %764 = vmatprep.subr.mxu0 0.0
    %765 = vmatpush2.msra.mxu0 0.0
    %766 = vmatprep.subr.mxu0 0.0
    %767 = vmatpush2.msra.mxu0 0.0
    %768 = vmatprep.subr.mxu0 0.0
    %769 = vmatpush2.msra.mxu0 0.0
    %770 = vmatprep.subr.mxu0 0.0
    %771 = vmatpush2.msra.mxu0 0.0
    %772 = vmatprep.subr.mxu0 0.0
    %773 = vmatpush2.msra.mxu0 0.0
    %774 = vmatprep.subr.mxu0 0.0
    %775 = vmatpush2.msra.mxu0 0.0
    %776 = vmatprep.subr.mxu0 0.0
    %777 = vmatpush2.msra.mxu0 0.0
    %778 = vmatprep.subr.mxu0 0.0
    %779 = vmatpush2.msra.mxu0 0.0
    %780 = vmatprep.mubr.f32.mxu0 0.0
    %781 = vmatmul.mubr.f32.gmra.mxu0 %v619
    %v782 = vpop.f32.mrf.mxu0
    %v783 = vadd.f32 0.0, %v782
    %v784 = vpop.f32.mrf.mxu0
    %785 = vmatprep.mubr.f32.mxu0 0.0
    %786 = vmatmul.mubr.f32.gmra.mxu0 %v621
    %v787 = vpop.f32.mrf.mxu0
    %v788 = vadd.f32 0.0, %v787
    %v789 = vpop.f32.mrf.mxu0
    %790 = vmatprep.mubr.f32.mxu0 0.0
    %791 = vmatmul.mubr.f32.gmra.mxu0 %v623
    %v792 = vpop.f32.mrf.mxu0
    %v793 = vadd.f32 0.0, %v792
    %v794 = vpop.f32.mrf.mxu0
    %795 = vmatprep.mubr.f32.mxu0 0.0
    %796 = vmatmul.mubr.f32.gmra.mxu0 %v625
    %v797 = vpop.f32.mrf.mxu0
    %v798 = vadd.f32 0.0, %v797
    %v799 = vpop.f32.mrf.mxu0
    %800 = vdwg.mxu0
    %v801 = vadd.f32 %v490, %v694
    %v802 = vadd.f32 %v492, %v696
    %v803 = vadd.f32 %v579, %v783
    %v804 = vadd.f32 %v496, %v700
    %v805 = vadd.f32 %v498, %v702
    %v806 = vadd.f32 %v584, %v788
    %v807 = vadd.f32 %v502, %v706
    %v808 = vadd.f32 %v504, %v708
    %v809 = vadd.f32 %v589, %v793
    %v810 = vadd.f32 %v508, %v712
    %v811 = vadd.f32 %v510, %v714
    %v812 = vadd.f32 %v594, %v798
    %v813 = vld [vmem:[#allocation3 + $0x120] sm:$0xff]
    %v814 = vld [vmem:[#allocation3 + $0x128] sm:$0xff]
    %v815 = vld [vmem:[#allocation3 + $0x130] sm:$0xff]
    %v816 = vld [vmem:[#allocation3 + $0x138] sm:$0xff]
    %v817 = vld [vmem:[#allocation3 + $0x140] sm:$0xff]
    %v818 = vld [vmem:[#allocation3 + $0x148] sm:$0xff]
    %v819 = vld [vmem:[#allocation3 + $0x150] sm:$0xff]
    %v820 = vld [vmem:[#allocation3 + $0x158] sm:$0xff]
    %v821 = vld [vmem:[#allocation3 + $0x160] sm:$0xff]
    %v822 = vld [vmem:[#allocation3 + $0x168] sm:$0xff]
    %v823 = vld [vmem:[#allocation3 + $0x170] sm:$0xff]
    %v824 = vld [vmem:[#allocation3 + $0x178] sm:$0xff]
    %vm825 = vcmask 1044480
    %v826 = vrot.slane %v170, 3
    %v827 = vrot.slane %v175, 3
    %v828 = vsel %vm825, %v826, %v827
    %v829 = vrot.slane %v180, 3
    %v830 = vsel %vm825, %v827, %v829
    %v831 = vrot.slane %v185, 3
    %v832 = vsel %vm825, %v829, %v831
    %v833 = vrot.slane %v190, 3
    %v834 = vsel %vm825, %v831, %v833
    %v835 = vsel %vm232, %v828, 0
    %v837 = vsel %vm232, %v830, 0
    %v839 = vsel %vm232, %v832, 0
    %v841 = vsel %vm232, %v834, 0
    %843 = vmatprep.subr.mxu0 0.0
    %844 = vmatpush1.msra.mxu0 0.0
    %845 = vmatprep.subr.mxu0 0.0
    %846 = vmatpush1.msra.mxu0 0.0
    %847 = vmatprep.subr.mxu0 0.0
    %848 = vmatpush1.msra.mxu0 0.0
    %849 = vmatprep.subr.mxu0 0.0
    %850 = vmatpush1.msra.mxu0 0.0
    %851 = vmatprep.subr.mxu0 0.0
    %852 = vmatpush1.msra.mxu0 0.0
    %853 = vmatprep.subr.mxu0 0.0
    %854 = vmatpush1.msra.mxu0 0.0
    %855 = vmatprep.subr.mxu0 0.0
    %856 = vmatpush1.msra.mxu0 0.0
    %857 = vmatprep.subr.mxu0 0.0
    %858 = vmatpush1.msra.mxu0 0.0
    %859 = vmatprep.subr.mxu0 0.0
    %860 = vmatpush1.msra.mxu0 0.0
    %861 = vmatprep.subr.mxu0 0.0
    %862 = vmatpush1.msra.mxu0 0.0
    %863 = vmatprep.subr.mxu0 0.0
    %864 = vmatpush1.msra.mxu0 0.0
    %865 = vmatprep.subr.mxu0 0.0
    %866 = vmatpush1.msra.mxu0 0.0
    %867 = vmatprep.subr.mxu0 %v823
    %868 = vmatpush1.msra.mxu0 %v822
    %869 = vmatprep.subr.mxu0 %v820
    %870 = vmatpush1.msra.mxu0 %v819
    %871 = vmatprep.subr.mxu0 %v817
    %872 = vmatpush1.msra.mxu0 %v816
    %873 = vmatprep.subr.mxu0 %v814
    %874 = vmatpush1.msra.mxu0 %v813
    %875 = vmatprep.subr.mxu0 0.0
    %876 = vmatpush2.msra.mxu0 0.0
    %877 = vmatprep.subr.mxu0 0.0
    %878 = vmatpush2.msra.mxu0 0.0
    %879 = vmatprep.subr.mxu0 0.0
    %880 = vmatpush2.msra.mxu0 0.0
    %881 = vmatprep.subr.mxu0 0.0
    %882 = vmatpush2.msra.mxu0 0.0
    %883 = vmatprep.subr.mxu0 0.0
    %884 = vmatpush2.msra.mxu0 0.0
    %885 = vmatprep.subr.mxu0 0.0
    %886 = vmatpush2.msra.mxu0 0.0
    %887 = vmatprep.subr.mxu0 0.0
    %888 = vmatpush2.msra.mxu0 0.0
    %889 = vmatprep.subr.mxu0 0.0
    %890 = vmatpush2.msra.mxu0 0.0
    %891 = vmatprep.subr.mxu0 0.0
    %892 = vmatpush2.msra.mxu0 0.0
    %893 = vmatprep.subr.mxu0 0.0
    %894 = vmatpush2.msra.mxu0 0.0
    %895 = vmatprep.subr.mxu0 0.0
    %896 = vmatpush2.msra.mxu0 0.0
    %897 = vmatprep.subr.mxu0 0.0
    %898 = vmatpush2.msra.mxu0 0.0
    %899 = vmatprep.subr.mxu0 0.0
    %900 = vmatpush2.msra.mxu0 0.0
    %901 = vmatprep.subr.mxu0 0.0
    %902 = vmatpush2.msra.mxu0 0.0
    %903 = vmatprep.subr.mxu0 0.0
    %904 = vmatpush2.msra.mxu0 0.0
    %905 = vmatprep.subr.mxu0 0.0
    %906 = vmatpush2.msra.mxu0 0.0
    %907 = vmatprep.mubr.f32.mxu0 0.0
    %908 = vmatmul.mubr.f32.gmra.mxu0 %v835
    %v909 = vpop.f32.mrf.mxu0
    %v910 = vadd.f32 0.0, %v909
    %v911 = vpop.f32.mrf.mxu0
    %v912 = vadd.f32 0.0, %v911
    %913 = vmatprep.mubr.f32.mxu0 0.0
    %914 = vmatmul.mubr.f32.gmra.mxu0 %v837
    %v915 = vpop.f32.mrf.mxu0
    %v916 = vadd.f32 0.0, %v915
    %v917 = vpop.f32.mrf.mxu0
    %v918 = vadd.f32 0.0, %v917
    %919 = vmatprep.mubr.f32.mxu0 0.0
    %920 = vmatmul.mubr.f32.gmra.mxu0 %v839
    %v921 = vpop.f32.mrf.mxu0
    %v922 = vadd.f32 0.0, %v921
    %v923 = vpop.f32.mrf.mxu0
    %v924 = vadd.f32 0.0, %v923
    %925 = vmatprep.mubr.f32.mxu0 0.0
    %926 = vmatmul.mubr.f32.gmra.mxu0 %v841
    %v927 = vpop.f32.mrf.mxu0
    %v928 = vadd.f32 0.0, %v927
    %v929 = vpop.f32.mrf.mxu0
    %v930 = vadd.f32 0.0, %v929
    %931 = vdwg.mxu0
    %932 = vmatprep.subr.mxu0 0.0
    %933 = vmatpush1.msra.mxu0 0.0
    %934 = vmatprep.subr.mxu0 0.0
    %935 = vmatpush1.msra.mxu0 0.0
    %936 = vmatprep.subr.mxu0 0.0
    %937 = vmatpush1.msra.mxu0 0.0
    %938 = vmatprep.subr.mxu0 0.0
    %939 = vmatpush1.msra.mxu0 0.0
    %940 = vmatprep.subr.mxu0 0.0
    %941 = vmatpush1.msra.mxu0 0.0
    %942 = vmatprep.subr.mxu0 0.0
    %943 = vmatpush1.msra.mxu0 0.0
    %944 = vmatprep.subr.mxu0 0.0
    %945 = vmatpush1.msra.mxu0 0.0
    %946 = vmatprep.subr.mxu0 0.0
    %947 = vmatpush1.msra.mxu0 0.0
    %948 = vmatprep.subr.mxu0 0.0
    %949 = vmatpush1.msra.mxu0 0.0
    %950 = vmatprep.subr.mxu0 0.0
    %951 = vmatpush1.msra.mxu0 0.0
    %952 = vmatprep.subr.mxu0 0.0
    %953 = vmatpush1.msra.mxu0 0.0
    %954 = vmatprep.subr.mxu0 0.0
    %955 = vmatpush1.msra.mxu0 0.0
    %956 = vmatprep.subr.mxu0 0.0
    %957 = vmatpush1.msra.mxu0 %v824
    %958 = vmatprep.subr.mxu0 0.0
    %959 = vmatpush1.msra.mxu0 %v821
    %960 = vmatprep.subr.mxu0 0.0
    %961 = vmatpush1.msra.mxu0 %v818
    %962 = vmatprep.subr.mxu0 0.0
    %963 = vmatpush1.msra.mxu0 %v815
    %964 = vmatprep.subr.mxu0 0.0
    %965 = vmatpush2.msra.mxu0 0.0
    %966 = vmatprep.subr.mxu0 0.0
    %967 = vmatpush2.msra.mxu0 0.0
    %968 = vmatprep.subr.mxu0 0.0
    %969 = vmatpush2.msra.mxu0 0.0
    %970 = vmatprep.subr.mxu0 0.0
    %971 = vmatpush2.msra.mxu0 0.0
    %972 = vmatprep.subr.mxu0 0.0
    %973 = vmatpush2.msra.mxu0 0.0
    %974 = vmatprep.subr.mxu0 0.0
    %975 = vmatpush2.msra.mxu0 0.0
    %976 = vmatprep.subr.mxu0 0.0
    %977 = vmatpush2.msra.mxu0 0.0
    %978 = vmatprep.subr.mxu0 0.0
    %979 = vmatpush2.msra.mxu0 0.0
    %980 = vmatprep.subr.mxu0 0.0
    %981 = vmatpush2.msra.mxu0 0.0
    %982 = vmatprep.subr.mxu0 0.0
    %983 = vmatpush2.msra.mxu0 0.0
    %984 = vmatprep.subr.mxu0 0.0
    %985 = vmatpush2.msra.mxu0 0.0
    %986 = vmatprep.subr.mxu0 0.0
    %987 = vmatpush2.msra.mxu0 0.0
    %988 = vmatprep.subr.mxu0 0.0
    %989 = vmatpush2.msra.mxu0 0.0
    %990 = vmatprep.subr.mxu0 0.0
    %991 = vmatpush2.msra.mxu0 0.0
    %992 = vmatprep.subr.mxu0 0.0
    %993 = vmatpush2.msra.mxu0 0.0
    %994 = vmatprep.subr.mxu0 0.0
    %995 = vmatpush2.msra.mxu0 0.0
    %996 = vmatprep.mubr.f32.mxu0 0.0
    %997 = vmatmul.mubr.f32.gmra.mxu0 %v835
    %v998 = vpop.f32.mrf.mxu0
    %v999 = vadd.f32 0.0, %v998
    %v1000 = vpop.f32.mrf.mxu0
    %1001 = vmatprep.mubr.f32.mxu0 0.0
    %1002 = vmatmul.mubr.f32.gmra.mxu0 %v837
    %v1003 = vpop.f32.mrf.mxu0
    %v1004 = vadd.f32 0.0, %v1003
    %v1005 = vpop.f32.mrf.mxu0
    %1006 = vmatprep.mubr.f32.mxu0 0.0
    %1007 = vmatmul.mubr.f32.gmra.mxu0 %v839
    %v1008 = vpop.f32.mrf.mxu0
    %v1009 = vadd.f32 0.0, %v1008
    %v1010 = vpop.f32.mrf.mxu0
    %1011 = vmatprep.mubr.f32.mxu0 0.0
    %1012 = vmatmul.mubr.f32.gmra.mxu0 %v841
    %v1013 = vpop.f32.mrf.mxu0
    %v1014 = vadd.f32 0.0, %v1013
    %v1015 = vpop.f32.mrf.mxu0
    %1016 = vdwg.mxu0
    %v1017 = vadd.f32 %v801, %v910
    %v1018 = vadd.f32 %v802, %v912
    %v1019 = vadd.f32 %v803, %v999
    %v1020 = vadd.f32 %v804, %v916
    %v1021 = vadd.f32 %v805, %v918
    %v1022 = vadd.f32 %v806, %v1004
    %v1023 = vadd.f32 %v807, %v922
    %v1024 = vadd.f32 %v808, %v924
    %v1025 = vadd.f32 %v809, %v1009
    %v1026 = vadd.f32 %v810, %v928
    %v1027 = vadd.f32 %v811, %v930
    %v1028 = vadd.f32 %v812, %v1014
    %v1029 = vld [vmem:[#allocation3 + $0x180] sm:$0xff]
    %v1030 = vld [vmem:[#allocation3 + $0x188] sm:$0xff]
    %v1031 = vld [vmem:[#allocation3 + $0x190] sm:$0xff]
    %v1032 = vld [vmem:[#allocation3 + $0x198] sm:$0xff]
    %v1033 = vld [vmem:[#allocation3 + $0x1a0] sm:$0xff]
    %v1034 = vld [vmem:[#allocation3 + $0x1a8] sm:$0xff]
    %v1035 = vld [vmem:[#allocation3 + $0x1b0] sm:$0xff]
    %v1036 = vld [vmem:[#allocation3 + $0x1b8] sm:$0xff]
    %v1037 = vld [vmem:[#allocation3 + $0x1c0] sm:$0xff]
    %v1038 = vld [vmem:[#allocation3 + $0x1c8] sm:$0xff]
    %v1039 = vld [vmem:[#allocation3 + $0x1d0] sm:$0xff]
    %v1040 = vld [vmem:[#allocation3 + $0x1d8] sm:$0xff]
    %vm1041 = vcmask 1043456
    %v1042 = vrot.slane %v170, 4
    %v1043 = vrot.slane %v175, 4
    %v1044 = vsel %vm1041, %v1042, %v1043
    %v1045 = vrot.slane %v180, 4
    %v1046 = vsel %vm1041, %v1043, %v1045
    %v1047 = vrot.slane %v185, 4
    %v1048 = vsel %vm1041, %v1045, %v1047
    %v1049 = vrot.slane %v190, 4
    %v1050 = vsel %vm1041, %v1047, %v1049
    %v1051 = vsel %vm232, %v1044, 0
    %v1053 = vsel %vm232, %v1046, 0
    %v1055 = vsel %vm232, %v1048, 0
    %v1057 = vsel %vm232, %v1050, 0
    %1059 = vmatprep.subr.mxu0 0.0
    %1060 = vmatpush1.msra.mxu0 0.0
    %1061 = vmatprep.subr.mxu0 0.0
    %1062 = vmatpush1.msra.mxu0 0.0
    %1063 = vmatprep.subr.mxu0 0.0
    %1064 = vmatpush1.msra.mxu0 0.0
    %1065 = vmatprep.subr.mxu0 0.0
    %1066 = vmatpush1.msra.mxu0 0.0
    %1067 = vmatprep.subr.mxu0 0.0
    %1068 = vmatpush1.msra.mxu0 0.0
    %1069 = vmatprep.subr.mxu0 0.0
    %1070 = vmatpush1.msra.mxu0 0.0
    %1071 = vmatprep.subr.mxu0 0.0
    %1072 = vmatpush1.msra.mxu0 0.0
    %1073 = vmatprep.subr.mxu0 0.0
    %1074 = vmatpush1.msra.mxu0 0.0
    %1075 = vmatprep.subr.mxu0 0.0
    %1076 = vmatpush1.msra.mxu0 0.0
    %1077 = vmatprep.subr.mxu0 0.0
    %1078 = vmatpush1.msra.mxu0 0.0
    %1079 = vmatprep.subr.mxu0 0.0
    %1080 = vmatpush1.msra.mxu0 0.0
    %1081 = vmatprep.subr.mxu0 0.0
    %1082 = vmatpush1.msra.mxu0 0.0
    %1083 = vmatprep.subr.mxu0 %v1039
    %1084 = vmatpush1.msra.mxu0 %v1038
    %1085 = vmatprep.subr.mxu0 %v1036
    %1086 = vmatpush1.msra.mxu0 %v1035
    %1087 = vmatprep.subr.mxu0 %v1033
    %1088 = vmatpush1.msra.mxu0 %v1032
    %1089 = vmatprep.subr.mxu0 %v1030
    %1090 = vmatpush1.msra.mxu0 %v1029
    %1091 = vmatprep.subr.mxu0 0.0
    %1092 = vmatpush2.msra.mxu0 0.0
    %1093 = vmatprep.subr.mxu0 0.0
    %1094 = vmatpush2.msra.mxu0 0.0
    %1095 = vmatprep.subr.mxu0 0.0
    %1096 = vmatpush2.msra.mxu0 0.0
    %1097 = vmatprep.subr.mxu0 0.0
    %1098 = vmatpush2.msra.mxu0 0.0
    %1099 = vmatprep.subr.mxu0 0.0
    %1100 = vmatpush2.msra.mxu0 0.0
    %1101 = vmatprep.subr.mxu0 0.0
    %1102 = vmatpush2.msra.mxu0 0.0
    %1103 = vmatprep.subr.mxu0 0.0
    %1104 = vmatpush2.msra.mxu0 0.0
    %1105 = vmatprep.subr.mxu0 0.0
    %1106 = vmatpush2.msra.mxu0 0.0
    %1107 = vmatprep.subr.mxu0 0.0
    %1108 = vmatpush2.msra.mxu0 0.0
    %1109 = vmatprep.subr.mxu0 0.0
    %1110 = vmatpush2.msra.mxu0 0.0
    %1111 = vmatprep.subr.mxu0 0.0
    %1112 = vmatpush2.msra.mxu0 0.0
    %1113 = vmatprep.subr.mxu0 0.0
    %1114 = vmatpush2.msra.mxu0 0.0
    %1115 = vmatprep.subr.mxu0 0.0
    %1116 = vmatpush2.msra.mxu0 0.0
    %1117 = vmatprep.subr.mxu0 0.0
    %1118 = vmatpush2.msra.mxu0 0.0
    %1119 = vmatprep.subr.mxu0 0.0
    %1120 = vmatpush2.msra.mxu0 0.0
    %1121 = vmatprep.subr.mxu0 0.0
    %1122 = vmatpush2.msra.mxu0 0.0
    %1123 = vmatprep.mubr.f32.mxu0 0.0
    %1124 = vmatmul.mubr.f32.gmra.mxu0 %v1051
    %v1125 = vpop.f32.mrf.mxu0
    %v1126 = vadd.f32 0.0, %v1125
    %v1127 = vpop.f32.mrf.mxu0
    %v1128 = vadd.f32 0.0, %v1127
    %1129 = vmatprep.mubr.f32.mxu0 0.0
    %1130 = vmatmul.mubr.f32.gmra.mxu0 %v1053
    %v1131 = vpop.f32.mrf.mxu0
    %v1132 = vadd.f32 0.0, %v1131
    %v1133 = vpop.f32.mrf.mxu0
    %v1134 = vadd.f32 0.0, %v1133
    %1135 = vmatprep.mubr.f32.mxu0 0.0
    %1136 = vmatmul.mubr.f32.gmra.mxu0 %v1055
    %v1137 = vpop.f32.mrf.mxu0
    %v1138 = vadd.f32 0.0, %v1137
    %v1139 = vpop.f32.mrf.mxu0
    %v1140 = vadd.f32 0.0, %v1139
    %1141 = vmatprep.mubr.f32.mxu0 0.0
    %1142 = vmatmul.mubr.f32.gmra.mxu0 %v1057
    %v1143 = vpop.f32.mrf.mxu0
    %v1144 = vadd.f32 0.0, %v1143
    %v1145 = vpop.f32.mrf.mxu0
    %v1146 = vadd.f32 0.0, %v1145
    %1147 = vdwg.mxu0
    %1148 = vmatprep.subr.mxu0 0.0
    %1149 = vmatpush1.msra.mxu0 0.0
    %1150 = vmatprep.subr.mxu0 0.0
    %1151 = vmatpush1.msra.mxu0 0.0
    %1152 = vmatprep.subr.mxu0 0.0
    %1153 = vmatpush1.msra.mxu0 0.0
    %1154 = vmatprep.subr.mxu0 0.0
    %1155 = vmatpush1.msra.mxu0 0.0
    %1156 = vmatprep.subr.mxu0 0.0
    %1157 = vmatpush1.msra.mxu0 0.0
    %1158 = vmatprep.subr.mxu0 0.0
    %1159 = vmatpush1.msra.mxu0 0.0
    %1160 = vmatprep.subr.mxu0 0.0
    %1161 = vmatpush1.msra.mxu0 0.0
    %1162 = vmatprep.subr.mxu0 0.0
    %1163 = vmatpush1.msra.mxu0 0.0
    %1164 = vmatprep.subr.mxu0 0.0
    %1165 = vmatpush1.msra.mxu0 0.0
    %1166 = vmatprep.subr.mxu0 0.0
    %1167 = vmatpush1.msra.mxu0 0.0
    %1168 = vmatprep.subr.mxu0 0.0
    %1169 = vmatpush1.msra.mxu0 0.0
    %1170 = vmatprep.subr.mxu0 0.0
    %1171 = vmatpush1.msra.mxu0 0.0
    %1172 = vmatprep.subr.mxu0 0.0
    %1173 = vmatpush1.msra.mxu0 %v1040
    %1174 = vmatprep.subr.mxu0 0.0
    %1175 = vmatpush1.msra.mxu0 %v1037
    %1176 = vmatprep.subr.mxu0 0.0
    %1177 = vmatpush1.msra.mxu0 %v1034
    %1178 = vmatprep.subr.mxu0 0.0
    %1179 = vmatpush1.msra.mxu0 %v1031
    %1180 = vmatprep.subr.mxu0 0.0
    %1181 = vmatpush2.msra.mxu0 0.0
    %1182 = vmatprep.subr.mxu0 0.0
    %1183 = vmatpush2.msra.mxu0 0.0
    %1184 = vmatprep.subr.mxu0 0.0
    %1185 = vmatpush2.msra.mxu0 0.0
    %1186 = vmatprep.subr.mxu0 0.0
    %1187 = vmatpush2.msra.mxu0 0.0
    %1188 = vmatprep.subr.mxu0 0.0
    %1189 = vmatpush2.msra.mxu0 0.0
    %1190 = vmatprep.subr.mxu0 0.0
    %1191 = vmatpush2.msra.mxu0 0.0
    %1192 = vmatprep.subr.mxu0 0.0
    %1193 = vmatpush2.msra.mxu0 0.0
    %1194 = vmatprep.subr.mxu0 0.0
    %1195 = vmatpush2.msra.mxu0 0.0
    %1196 = vmatprep.subr.mxu0 0.0
    %1197 = vmatpush2.msra.mxu0 0.0
    %1198 = vmatprep.subr.mxu0 0.0
    %1199 = vmatpush2.msra.mxu0 0.0
    %1200 = vmatprep.subr.mxu0 0.0
    %1201 = vmatpush2.msra.mxu0 0.0
    %1202 = vmatprep.subr.mxu0 0.0
    %1203 = vmatpush2.msra.mxu0 0.0
    %1204 = vmatprep.subr.mxu0 0.0
    %1205 = vmatpush2.msra.mxu0 0.0
    %1206 = vmatprep.subr.mxu0 0.0
    %1207 = vmatpush2.msra.mxu0 0.0
    %1208 = vmatprep.subr.mxu0 0.0
    %1209 = vmatpush2.msra.mxu0 0.0
    %1210 = vmatprep.subr.mxu0 0.0
    %1211 = vmatpush2.msra.mxu0 0.0
    %1212 = vmatprep.mubr.f32.mxu0 0.0
    %1213 = vmatmul.mubr.f32.gmra.mxu0 %v1051
    %v1214 = vpop.f32.mrf.mxu0
    %v1215 = vadd.f32 0.0, %v1214
    %v1216 = vpop.f32.mrf.mxu0
    %1217 = vmatprep.mubr.f32.mxu0 0.0
    %1218 = vmatmul.mubr.f32.gmra.mxu0 %v1053
    %v1219 = vpop.f32.mrf.mxu0
    %v1220 = vadd.f32 0.0, %v1219
    %v1221 = vpop.f32.mrf.mxu0
    %1222 = vmatprep.mubr.f32.mxu0 0.0
    %1223 = vmatmul.mubr.f32.gmra.mxu0 %v1055
    %v1224 = vpop.f32.mrf.mxu0
    %v1225 = vadd.f32 0.0, %v1224
    %v1226 = vpop.f32.mrf.mxu0
    %1227 = vmatprep.mubr.f32.mxu0 0.0
    %1228 = vmatmul.mubr.f32.gmra.mxu0 %v1057
    %v1229 = vpop.f32.mrf.mxu0
    %v1230 = vadd.f32 0.0, %v1229
    %v1231 = vpop.f32.mrf.mxu0
    %1232 = vdwg.mxu0
    %v1233 = vadd.f32 %v1017, %v1126
    %v1234 = vadd.f32 %v1018, %v1128
    %v1235 = vadd.f32 %v1019, %v1215
    %v1236 = vadd.f32 %v1020, %v1132
    %v1237 = vadd.f32 %v1021, %v1134
    %v1238 = vadd.f32 %v1022, %v1220
    %v1239 = vadd.f32 %v1023, %v1138
    %v1240 = vadd.f32 %v1024, %v1140
    %v1241 = vadd.f32 %v1025, %v1225
    %v1242 = vadd.f32 %v1026, %v1144
    %v1243 = vadd.f32 %v1027, %v1146
    %v1244 = vadd.f32 %v1028, %v1230
    %v1245 = vld [vmem:[#allocation3 + $0x1e0] sm:$0xff]
    %v1246 = vld [vmem:[#allocation3 + $0x1e8] sm:$0xff]
    %v1247 = vld [vmem:[#allocation3 + $0x1f0] sm:$0xff]
    %v1248 = vld [vmem:[#allocation3 + $0x1f8] sm:$0xff]
    %v1249 = vld [vmem:[#allocation3 + $0x200] sm:$0xff]
    %v1250 = vld [vmem:[#allocation3 + $0x208] sm:$0xff]
    %v1251 = vld [vmem:[#allocation3 + $0x210] sm:$0xff]
    %v1252 = vld [vmem:[#allocation3 + $0x218] sm:$0xff]
    %v1253 = vld [vmem:[#allocation3 + $0x220] sm:$0xff]
    %v1254 = vld [vmem:[#allocation3 + $0x228] sm:$0xff]
    %v1255 = vld [vmem:[#allocation3 + $0x230] sm:$0xff]
    %v1256 = vld [vmem:[#allocation3 + $0x238] sm:$0xff]
    %vm1257 = vcmask 1042432
    %v1258 = vrot.slane %v170, 5
    %v1259 = vrot.slane %v175, 5
    %v1260 = vsel %vm1257, %v1258, %v1259
    %v1261 = vrot.slane %v180, 5
    %v1262 = vsel %vm1257, %v1259, %v1261
    %v1263 = vrot.slane %v185, 5
    %v1264 = vsel %vm1257, %v1261, %v1263
    %v1265 = vrot.slane %v190, 5
    %v1266 = vsel %vm1257, %v1263, %v1265
    %v1267 = vsel %vm232, %v1260, 0
    %v1269 = vsel %vm232, %v1262, 0
    %v1271 = vsel %vm232, %v1264, 0
    %v1273 = vsel %vm232, %v1266, 0
    %1275 = vmatprep.subr.mxu0 0.0
    %1276 = vmatpush1.msra.mxu0 0.0
    %1277 = vmatprep.subr.mxu0 0.0
    %1278 = vmatpush1.msra.mxu0 0.0
    %1279 = vmatprep.subr.mxu0 0.0
    %1280 = vmatpush1.msra.mxu0 0.0
    %1281 = vmatprep.subr.mxu0 0.0
    %1282 = vmatpush1.msra.mxu0 0.0
    %1283 = vmatprep.subr.mxu0 0.0
    %1284 = vmatpush1.msra.mxu0 0.0
    %1285 = vmatprep.subr.mxu0 0.0
    %1286 = vmatpush1.msra.mxu0 0.0
    %1287 = vmatprep.subr.mxu0 0.0
    %1288 = vmatpush1.msra.mxu0 0.0
    %1289 = vmatprep.subr.mxu0 0.0
    %1290 = vmatpush1.msra.mxu0 0.0
    %1291 = vmatprep.subr.mxu0 0.0
    %1292 = vmatpush1.msra.mxu0 0.0
    %1293 = vmatprep.subr.mxu0 0.0
    %1294 = vmatpush1.msra.mxu0 0.0
    %1295 = vmatprep.subr.mxu0 0.0
    %1296 = vmatpush1.msra.mxu0 0.0
    %1297 = vmatprep.subr.mxu0 0.0
    %1298 = vmatpush1.msra.mxu0 0.0
    %1299 = vmatprep.subr.mxu0 %v1255
    %1300 = vmatpush1.msra.mxu0 %v1254
    %1301 = vmatprep.subr.mxu0 %v1252
    %1302 = vmatpush1.msra.mxu0 %v1251
    %1303 = vmatprep.subr.mxu0 %v1249
    %1304 = vmatpush1.msra.mxu0 %v1248
    %1305 = vmatprep.subr.mxu0 %v1246
    %1306 = vmatpush1.msra.mxu0 %v1245
    %1307 = vmatprep.subr.mxu0 0.0
    %1308 = vmatpush2.msra.mxu0 0.0
    %1309 = vmatprep.subr.mxu0 0.0
    %1310 = vmatpush2.msra.mxu0 0.0
    %1311 = vmatprep.subr.mxu0 0.0
    %1312 = vmatpush2.msra.mxu0 0.0
    %1313 = vmatprep.subr.mxu0 0.0
    %1314 = vmatpush2.msra.mxu0 0.0
    %1315 = vmatprep.subr.mxu0 0.0
    %1316 = vmatpush2.msra.mxu0 0.0
    %1317 = vmatprep.subr.mxu0 0.0
    %1318 = vmatpush2.msra.mxu0 0.0
    %1319 = vmatprep.subr.mxu0 0.0
    %1320 = vmatpush2.msra.mxu0 0.0
    %1321 = vmatprep.subr.mxu0 0.0
    %1322 = vmatpush2.msra.mxu0 0.0
    %1323 = vmatprep.subr.mxu0 0.0
    %1324 = vmatpush2.msra.mxu0 0.0
    %1325 = vmatprep.subr.mxu0 0.0
    %1326 = vmatpush2.msra.mxu0 0.0
    %1327 = vmatprep.subr.mxu0 0.0
    %1328 = vmatpush2.msra.mxu0 0.0
    %1329 = vmatprep.subr.mxu0 0.0
    %1330 = vmatpush2.msra.mxu0 0.0
    %1331 = vmatprep.subr.mxu0 0.0
    %1332 = vmatpush2.msra.mxu0 0.0
    %1333 = vmatprep.subr.mxu0 0.0
    %1334 = vmatpush2.msra.mxu0 0.0
    %1335 = vmatprep.subr.mxu0 0.0
    %1336 = vmatpush2.msra.mxu0 0.0
    %1337 = vmatprep.subr.mxu0 0.0
    %1338 = vmatpush2.msra.mxu0 0.0
    %1339 = vmatprep.mubr.f32.mxu0 0.0
    %1340 = vmatmul.mubr.f32.gmra.mxu0 %v1267
    %v1341 = vpop.f32.mrf.mxu0
    %v1342 = vadd.f32 0.0, %v1341
    %v1343 = vpop.f32.mrf.mxu0
    %v1344 = vadd.f32 0.0, %v1343
    %1345 = vmatprep.mubr.f32.mxu0 0.0
    %1346 = vmatmul.mubr.f32.gmra.mxu0 %v1269
    %v1347 = vpop.f32.mrf.mxu0
    %v1348 = vadd.f32 0.0, %v1347
    %v1349 = vpop.f32.mrf.mxu0
    %v1350 = vadd.f32 0.0, %v1349
    %1351 = vmatprep.mubr.f32.mxu0 0.0
    %1352 = vmatmul.mubr.f32.gmra.mxu0 %v1271
    %v1353 = vpop.f32.mrf.mxu0
    %v1354 = vadd.f32 0.0, %v1353
    %v1355 = vpop.f32.mrf.mxu0
    %v1356 = vadd.f32 0.0, %v1355
    %1357 = vmatprep.mubr.f32.mxu0 0.0
    %1358 = vmatmul.mubr.f32.gmra.mxu0 %v1273
    %v1359 = vpop.f32.mrf.mxu0
    %v1360 = vadd.f32 0.0, %v1359
    %v1361 = vpop.f32.mrf.mxu0
    %v1362 = vadd.f32 0.0, %v1361
    %1363 = vdwg.mxu0
    %1364 = vmatprep.subr.mxu0 0.0
    %1365 = vmatpush1.msra.mxu0 0.0
    %1366 = vmatprep.subr.mxu0 0.0
    %1367 = vmatpush1.msra.mxu0 0.0
    %1368 = vmatprep.subr.mxu0 0.0
    %1369 = vmatpush1.msra.mxu0 0.0
    %1370 = vmatprep.subr.mxu0 0.0
    %1371 = vmatpush1.msra.mxu0 0.0
    %1372 = vmatprep.subr.mxu0 0.0
    %1373 = vmatpush1.msra.mxu0 0.0
    %1374 = vmatprep.subr.mxu0 0.0
    %1375 = vmatpush1.msra.mxu0 0.0
    %1376 = vmatprep.subr.mxu0 0.0
    %1377 = vmatpush1.msra.mxu0 0.0
    %1378 = vmatprep.subr.mxu0 0.0
    %1379 = vmatpush1.msra.mxu0 0.0
    %1380 = vmatprep.subr.mxu0 0.0
    %1381 = vmatpush1.msra.mxu0 0.0
    %1382 = vmatprep.subr.mxu0 0.0
    %1383 = vmatpush1.msra.mxu0 0.0
    %1384 = vmatprep.subr.mxu0 0.0
    %1385 = vmatpush1.msra.mxu0 0.0
    %1386 = vmatprep.subr.mxu0 0.0
    %1387 = vmatpush1.msra.mxu0 0.0
    %1388 = vmatprep.subr.mxu0 0.0
    %1389 = vmatpush1.msra.mxu0 %v1256
    %1390 = vmatprep.subr.mxu0 0.0
    %1391 = vmatpush1.msra.mxu0 %v1253
    %1392 = vmatprep.subr.mxu0 0.0
    %1393 = vmatpush1.msra.mxu0 %v1250
    %1394 = vmatprep.subr.mxu0 0.0
    %1395 = vmatpush1.msra.mxu0 %v1247
    %1396 = vmatprep.subr.mxu0 0.0
    %1397 = vmatpush2.msra.mxu0 0.0
    %1398 = vmatprep.subr.mxu0 0.0
    %1399 = vmatpush2.msra.mxu0 0.0
    %1400 = vmatprep.subr.mxu0 0.0
    %1401 = vmatpush2.msra.mxu0 0.0
    %1402 = vmatprep.subr.mxu0 0.0
    %1403 = vmatpush2.msra.mxu0 0.0
    %1404 = vmatprep.subr.mxu0 0.0
    %1405 = vmatpush2.msra.mxu0 0.0
    %1406 = vmatprep.subr.mxu0 0.0
    %1407 = vmatpush2.msra.mxu0 0.0
    %1408 = vmatprep.subr.mxu0 0.0
    %1409 = vmatpush2.msra.mxu0 0.0
    %1410 = vmatprep.subr.mxu0 0.0
    %1411 = vmatpush2.msra.mxu0 0.0
    %1412 = vmatprep.subr.mxu0 0.0
    %1413 = vmatpush2.msra.mxu0 0.0
    %1414 = vmatprep.subr.mxu0 0.0
    %1415 = vmatpush2.msra.mxu0 0.0
    %1416 = vmatprep.subr.mxu0 0.0
    %1417 = vmatpush2.msra.mxu0 0.0
    %1418 = vmatprep.subr.mxu0 0.0
    %1419 = vmatpush2.msra.mxu0 0.0
    %1420 = vmatprep.subr.mxu0 0.0
    %1421 = vmatpush2.msra.mxu0 0.0
    %1422 = vmatprep.subr.mxu0 0.0
    %1423 = vmatpush2.msra.mxu0 0.0
    %1424 = vmatprep.subr.mxu0 0.0
    %1425 = vmatpush2.msra.mxu0 0.0
    %1426 = vmatprep.subr.mxu0 0.0
    %1427 = vmatpush2.msra.mxu0 0.0
    %1428 = vmatprep.mubr.f32.mxu0 0.0
    %1429 = vmatmul.mubr.f32.gmra.mxu0 %v1267
    %v1430 = vpop.f32.mrf.mxu0
    %v1431 = vadd.f32 0.0, %v1430
    %v1432 = vpop.f32.mrf.mxu0
    %1433 = vmatprep.mubr.f32.mxu0 0.0
    %1434 = vmatmul.mubr.f32.gmra.mxu0 %v1269
    %v1435 = vpop.f32.mrf.mxu0
    %v1436 = vadd.f32 0.0, %v1435
    %v1437 = vpop.f32.mrf.mxu0
    %1438 = vmatprep.mubr.f32.mxu0 0.0
    %1439 = vmatmul.mubr.f32.gmra.mxu0 %v1271
    %v1440 = vpop.f32.mrf.mxu0
    %v1441 = vadd.f32 0.0, %v1440
    %v1442 = vpop.f32.mrf.mxu0
    %1443 = vmatprep.mubr.f32.mxu0 0.0
    %1444 = vmatmul.mubr.f32.gmra.mxu0 %v1273
    %v1445 = vpop.f32.mrf.mxu0
    %v1446 = vadd.f32 0.0, %v1445
    %v1447 = vpop.f32.mrf.mxu0
    %1448 = vdwg.mxu0
    %v1449 = vadd.f32 %v1233, %v1342
    %v1450 = vadd.f32 %v1234, %v1344
    %v1451 = vadd.f32 %v1235, %v1431
    %v1452 = vadd.f32 %v1236, %v1348
    %v1453 = vadd.f32 %v1237, %v1350
    %v1454 = vadd.f32 %v1238, %v1436
    %v1455 = vadd.f32 %v1239, %v1354
    %v1456 = vadd.f32 %v1240, %v1356
    %v1457 = vadd.f32 %v1241, %v1441
    %v1458 = vadd.f32 %v1242, %v1360
    %v1459 = vadd.f32 %v1243, %v1362
    %v1460 = vadd.f32 %v1244, %v1446
    %v1461 = vld [vmem:[%s3] sm:$0x7]
    %v1463 = vlaneseq
    %v1464 = vshrl.u32 %v1463, 7
    %v1465 = vsub.s32 0, %v1464
    %v1466 = vrot.slane %v1461, %v1465
    %v1467 = vlaneseq
    %v1468 = vshrl.u32 %v1467, 7
    %v1469 = vsub.s32 1, %v1468
    %v1470 = vrot.slane %v1461, %v1469
    %v1471 = vlaneseq
    %v1472 = vshrl.u32 %v1471, 7
    %v1473 = vsub.s32 2, %v1472
    %v1474 = vrot.slane %v1461, %v1473
    %v1478 = vadd.f32 %v1449, %v1466
    %v1479 = vadd.f32 %v1450, %v1470
    %v1480 = vadd.f32 %v1451, %v1474
    %v1481 = vadd.f32 %v1452, %v1466
    %v1482 = vadd.f32 %v1453, %v1470
    %v1483 = vadd.f32 %v1454, %v1474
    %v1484 = vadd.f32 %v1455, %v1466
    %v1485 = vadd.f32 %v1456, %v1470
    %v1486 = vadd.f32 %v1457, %v1474
    %v1487 = vadd.f32 %v1458, %v1466
    %v1488 = vadd.f32 %v1459, %v1470
    %v1489 = vadd.f32 %v1460, %v1474
    %vm1490 = vcmp.gt.f32.partialorder %v1478, 0.0
    %vm1491 = vcmp.gt.f32.partialorder %v1479, 0.0
    %vm1492 = vcmp.gt.f32.partialorder %v1480, 0.0
    %vm1493 = vcmp.gt.f32.partialorder %v1481, 0.0
    %vm1494 = vcmp.gt.f32.partialorder %v1482, 0.0
    %vm1495 = vcmp.gt.f32.partialorder %v1483, 0.0
    %vm1496 = vcmp.gt.f32.partialorder %v1484, 0.0
    %vm1497 = vcmp.gt.f32.partialorder %v1485, 0.0
    %vm1498 = vcmp.gt.f32.partialorder %v1486, 0.0
    %vm1499 = vcmp.gt.f32.partialorder %v1487, 0.0
    %vm1500 = vcmp.gt.f32.partialorder %v1488, 0.0
    %vm1501 = vcmp.gt.f32.partialorder %v1489, 0.0
    %v1502 = vmul.f32 %v1478, 0.01
    %v1503 = vmul.f32 %v1479, 0.01
    %v1504 = vmul.f32 %v1480, 0.01
    %v1505 = vmul.f32 %v1481, 0.01
    %v1506 = vmul.f32 %v1482, 0.01
    %v1507 = vmul.f32 %v1483, 0.01
    %v1508 = vmul.f32 %v1484, 0.01
    %v1509 = vmul.f32 %v1485, 0.01
    %v1510 = vmul.f32 %v1486, 0.01
    %v1511 = vmul.f32 %v1487, 0.01
    %v1512 = vmul.f32 %v1488, 0.01
    %v1513 = vmul.f32 %v1489, 0.01
    %v1514 = vsel %vm1490, %v1478, %v1502
    %v1515 = vsel %vm1491, %v1479, %v1503
    %v1516 = vsel %vm1492, %v1480, %v1504
    %v1517 = vsel %vm1493, %v1481, %v1505
    %v1518 = vsel %vm1494, %v1482, %v1506
    %v1519 = vsel %vm1495, %v1483, %v1507
    %v1520 = vsel %vm1496, %v1484, %v1508
    %v1521 = vsel %vm1497, %v1485, %v1509
    %v1522 = vsel %vm1498, %v1486, %v1510
    %v1523 = vsel %vm1499, %v1487, %v1511
    %v1524 = vsel %vm1500, %v1488, %v1512
    %v1525 = vsel %vm1501, %v1489, %v1513
    %v1526 = vld [vmem:[%s4] sm:$0xff]
    %v1527 = vld [vmem:[%s4 + $0x8] sm:$0xff]
    %v1528 = vld [vmem:[%s4 + $0x10] sm:$0xff]
    %v1529 = vld [vmem:[%s4 + $0x18] sm:$0xff]
    %v1530 = vld [vmem:[%s4 + $0x20] sm:$0xff]
    %v1531 = vld [vmem:[%s4 + $0x28] sm:$0xff]
    %v1532 = vadd.f32 %v1514, %v1526
    %v1533 = vadd.f32 %v1515, %v1527
    %v1534 = vadd.f32 %v1516, %v1528
    %v1535 = vadd.f32 %v1517, %v1529
    %v1536 = vadd.f32 %v1518, %v1530
    %v1537 = vadd.f32 %v1519, %v1531
    %v1538 = vmax.f32 %v1532, %v1535
    %v1539 = vrot.slane %v1538, 4
    %v1540 = vmax.f32 %v1538, %v1539
    %v1541 = vrot.slane %v1540, 2
    %v1542 = vmax.f32 %v1540, %v1541
    %v1543 = vrot.slane %v1542, 1
    %v1544 = vmax.f32 %v1542, %v1543
    %v1545 = vmax.f32 %v1533, %v1536
    %v1546 = vrot.slane %v1545, 4
    %v1547 = vmax.f32 %v1545, %v1546
    %v1548 = vrot.slane %v1547, 2
    %v1549 = vmax.f32 %v1547, %v1548
    %v1550 = vrot.slane %v1549, 1
    %v1551 = vmax.f32 %v1549, %v1550
    %v1552 = vmax.f32 %v1534, %v1537
    %v1553 = vrot.slane %v1552, 4
    %v1554 = vmax.f32 %v1552, %v1553
    %v1555 = vrot.slane %v1554, 2
    %v1556 = vmax.f32 %v1554, %v1555
    %v1557 = vrot.slane %v1556, 1
    %v1558 = vmax.f32 %v1556, %v1557
    %v1559 = vadd.f32 %v1520, %v1526
    %v1560 = vadd.f32 %v1521, %v1527
    %v1561 = vadd.f32 %v1522, %v1528
    %v1562 = vadd.f32 %v1523, %v1529
    %v1563 = vadd.f32 %v1524, %v1530
    %v1564 = vadd.f32 %v1525, %v1531
    %v1565 = vmax.f32 %v1559, %v1562
    %v1566 = vrot.slane %v1565, 4
    %v1567 = vmax.f32 %v1565, %v1566
    %v1568 = vrot.slane %v1567, 2
    %v1569 = vmax.f32 %v1567, %v1568
    %v1570 = vrot.slane %v1569, 1
    %v1571 = vmax.f32 %v1569, %v1570
    %v1572 = vmax.f32 %v1560, %v1563
    %v1573 = vrot.slane %v1572, 4
    %v1574 = vmax.f32 %v1572, %v1573
    %v1575 = vrot.slane %v1574, 2
    %v1576 = vmax.f32 %v1574, %v1575
    %v1577 = vrot.slane %v1576, 1
    %v1578 = vmax.f32 %v1576, %v1577
    %v1579 = vmax.f32 %v1561, %v1564
    %v1580 = vrot.slane %v1579, 4
    %v1581 = vmax.f32 %v1579, %v1580
    %v1582 = vrot.slane %v1581, 2
    %v1583 = vmax.f32 %v1581, %v1582
    %v1584 = vrot.slane %v1583, 1
    %v1585 = vmax.f32 %v1583, %v1584
    %vm1586 = vcmask 1040384
    %v1587 = vsel %vm1586, %v1544, %v1571
    %v1588 = vsel %vm1586, %v1551, %v1578
    %v1589 = vsel %vm1586, %v1558, %v1585
    %v1590 = vld [vmem:[%s5] sm:$0x7]
    %v1592 = vlaneseq
    %v1593 = vshrl.u32 %v1592, 7
    %v1594 = vsub.s32 0, %v1593
    %v1595 = vrot.slane %v1590, %v1594
    %v1596 = vlaneseq
    %v1597 = vshrl.u32 %v1596, 7
    %v1598 = vsub.s32 1, %v1597
    %v1599 = vrot.slane %v1590, %v1598
    %v1600 = vlaneseq
    %v1601 = vshrl.u32 %v1600, 7
    %v1602 = vsub.s32 2, %v1601
    %v1603 = vrot.slane %v1590, %v1602
    %v1607 = vmul.f32 %v1587, %v1595
    %v1608 = vmul.f32 %v1588, %v1599
    %v1609 = vmul.f32 %v1589, %v1603
    %vm1610 = vcmask 1041408
    %v1611 = vsel %vm1610, %v1607, 0.0
    %v1612 = vsel %vm1610, %v1608, 0.0
    %v1613 = vadd.f32 %v1611, %v1612
    %v1614 = vsel %vm1610, %v1609, 0.0
    %v1615 = vadd.f32 %v1613, %v1614
    %1616 = vadd.xlane.f32.xlu0 %v1615
    %v1617 = vpop.xlane.xlu0 %1616
    %v1618 = vld [vmem:[#allocation2] sm:$0x1]
    %v1620 = vlaneseq
    %v1621 = vshrl.u32 %v1620, 7
    %v1622 = vsub.s32 0, %v1621
    %v1623 = vrot.slane %v1618, %v1622
    %v1625 = vadd.f32 %v1617, %v1623
    %vm1626 = vcmask 1024
    %1627 = vst.msk [vmem:[%s7] sm:$0x3] %vm1626, %v1625
    // Predicated region
    $region34: #{tpu_custom_call.1} parent=1 // pred_check
      _
    $region35: #{tpu_custom_call.1} parent=1 // pred_check_branch
      %1629 = sbr.rel (0) target = $region37
    $region36: #{tpu_custom_call.1} parent=1 // pred_region
      _
    $region37: #{tpu_custom_call.1} parent=1 // pred_fallthru
      _
    // Predicated region
    $region38: #{tpu_custom_call.1} parent=1 // pred_check
      _
    $region39: #{tpu_custom_call.1} parent=1 // pred_check_branch
      %1631 = sbr.rel (0) target = $region41
    $region40: #{tpu_custom_call.1} parent=1 // pred_region
      _
    $region41: #{tpu_custom_call.1} parent=1 // pred_fallthru
      _
    %1632 = vsyncpa [#allocation4], 1

</llo_original>
